<compile_context>
chip_gen: v7x
topology: tpu7x:2x2x1
jax: 0.10.0
libtpu: 0.0.40
codegen_flags: <defaults>
</compile_context>

<pallas_src>
import math

import numpy as np
import jax
import jax.numpy as jnp
from jax import lax
from jax.experimental import pallas as pl
from jax.experimental.pallas import tpu as pltpu

# ----------------------------- config (small, deterministic) -----------------------------
DIM_G, DIM_O, DIM_P = 8, 8, 8
DIM_Z = 8
T = 16
D = DIM_G + DIM_O + DIM_P                 # 24
SAMPLE_REC = 1
KERNEL_SIZES = [11, 7, 5, 3]              # only the first num_convs[0]+num_convs[1] entries used
NUM_CONVS = (3, 1)

N_IN = T * D                              # 384 : flattened input / contraction length (k*128)
N_HEAD = T * DIM_Z                        # 128 : flattened length of one head
N_OUT = 6 * N_HEAD                        # 768 : [mg | mo | mp | lg | lo | lp]
M_TILE = 8                                # sequences per grid step (8 sublane rows; f32 result = 6 vregs)


# ----------------------------- Pallas kernel -----------------------------
def _poe_kernel(x_ref, noise_ref, w_ref, b_ref, sample_ref, ent_ref):
    # One fused MXU contraction for M_TILE independent sequences: all 3 modalities, both heads,
    # all stacked convs.  Exact f32 bias is added on the VPU after the matmul.
    big = jnp.dot(x_ref[...], w_ref[...],
                  preferred_element_type=jnp.float32) + b_ref[...]     # [M_TILE, N_OUT] f32

    mg  = big[:, 0 * N_HEAD:1 * N_HEAD]
    mo  = big[:, 1 * N_HEAD:2 * N_HEAD]
    mp_ = big[:, 2 * N_HEAD:3 * N_HEAD]
    lg  = big[:, 3 * N_HEAD:4 * N_HEAD]
    lo  = big[:, 4 * N_HEAD:5 * N_HEAD]
    lp  = big[:, 5 * N_HEAD:6 * N_HEAD]

    third = 1.0 / 3.0
    mean_c = (mg + mo + mp_) * third
    var_c = (jnp.exp(2.0 * lg) + (mg - mean_c) ** 2
             + jnp.exp(2.0 * lo) + (mo - mean_c) ** 2
             + jnp.exp(2.0 * lp) + (mp_ - mean_c) ** 2) * third
    log_sqrt_var_c = 0.5 * jnp.log(var_c)

    if SAMPLE_REC == 1:
        res = mean_c + jnp.exp(log_sqrt_var_c) * noise_ref[...]        # [M_TILE, N_HEAD]
    else:
        res = mean_c

    ent = jnp.sum(log_sqrt_var_c, axis=1, keepdims=True) * (1.0 / T)   # [M_TILE, 1]

    # full-tile, lane-dense, unmasked stores
    sample_ref[...] = res
    ent_ref[...] = jnp.broadcast_to(ent, (M_TILE, N_HEAD))


# ----------------------------- host-side fused-operator construction -----------------------------
def _conv1d_ref(x, w, b):
    """'same' Conv1d reference in [T, C] layout. w: [K, Cin, Cout] (w[k,ci,co]==torch_w[co,ci,k])."""
    k = w.shape[0]
    pad = k // 2
    x_ncw = x.T[None]                          # [1, Cin, T]
    w_oik = jnp.transpose(w, (2, 1, 0))        # [Cout, Cin, K]  (torch layout; cross-correlation)
    y = lax.conv_general_dilated(x_ncw, w_oik, (1,), [(pad, pad)],
                                 dimension_numbers=('NCH', 'OIH', 'NCH'))
    return y[0].T + b


def _encode_ref(x, params):
    """StackedConvolutions.get_mean_and_log_var for one modality (in [T, C] layout)."""
    w0, b0, w1, b1, w2, b2, wl, bl = params
    h = _conv1d_ref(x, w0, b0)
    h = _conv1d_ref(h, w1, b1)
    return _conv1d_ref(h, w2, b2), _conv1d_ref(x, wl, bl)


def _heads_flat(xf, params_g, params_o, params_p):
    """All six heads of the encoder, flattened: [mg|mo|mp|lg|lo|lp] -> [N_OUT]."""
    x = xf.reshape(T, D)
    g = x[:, :DIM_G]
    o = x[:, DIM_G:DIM_G + DIM_O]
    p = x[:, DIM_G + DIM_O:]
    mg, lg = _encode_ref(g, params_g)
    mo, lo = _encode_ref(o, params_o)
    mp_, lp = _encode_ref(p, params_p)
    return jnp.concatenate([mg.reshape(-1), mo.reshape(-1), mp_.reshape(-1),
                            lg.reshape(-1), lo.reshape(-1), lp.reshape(-1)])


def build_fused_operator(params_g, params_o, params_p):
    """Compose all convs / modalities / heads into one [N_IN, N_OUT] bf16 matrix + f32 bias slab."""
    fn = lambda xf: _heads_flat(xf, params_g, params_o, params_p)
    zeros = jnp.zeros((N_IN,), jnp.float32)
    bias = fn(zeros)                           # [N_OUT] — captures boundary-dependent bias exactly
    A = jax.jacfwd(fn)(zeros)                  # [N_OUT, N_IN] — exact linear part
    w = A.T.astype(jnp.bfloat16)               # [N_IN, N_OUT] bf16 (MXU operand)
    bias_slab = jnp.broadcast_to(bias[None, :], (M_TILE, N_OUT)).astype(jnp.float32)
    return w, bias_slab


# ----------------------------- wrappers -----------------------------
def poe_stacked_convolutions_batched(x, noise, w, bias):
    """x: [B, T, D] f32, noise: [B, T, DIM_Z] f32, w: [N_IN, N_OUT] bf16, bias: [M_TILE, N_OUT] f32.

    Returns (samples [B, T, DIM_Z] f32, entropies [B] f32); each batch row is one independent
    forward() of the PyTorch module.
    """
    B = x.shape[0]
    B_pad = ((B + M_TILE - 1) // M_TILE) * M_TILE

    x_slab = jnp.zeros((B_pad, N_IN), jnp.float32)
    x_slab = x_slab.at[:B].set(x.reshape(B, N_IN)).astype(jnp.bfloat16)
    noise_slab = jnp.zeros((B_pad, N_HEAD), jnp.float32)
    noise_slab = noise_slab.at[:B].set(noise.reshape(B, N_HEAD))

    grid = (B_pad // M_TILE,)
    sample_out, ent_out = pl.pallas_call(
        _poe_kernel,
        out_shape=(jax.ShapeDtypeStruct((B_pad, N_HEAD), jnp.float32),
                   jax.ShapeDtypeStruct((B_pad, N_HEAD), jnp.float32)),
        grid_spec=pltpu.PrefetchScalarGridSpec(
            num_scalar_prefetch=0,
            grid=grid,
            in_specs=[
                pl.BlockSpec((M_TILE, N_IN),   lambda b: (b, 0)),   # per-step x tile
                pl.BlockSpec((M_TILE, N_HEAD), lambda b: (b, 0)),   # per-step noise tile
                pl.BlockSpec((N_IN, N_OUT),    lambda b: (0, 0)),   # fused weights: constant -> VMEM-resident
                pl.BlockSpec((M_TILE, N_OUT),  lambda b: (0, 0)),   # f32 bias: constant -> VMEM-resident
            ],
            out_specs=[
                pl.BlockSpec((M_TILE, N_HEAD), lambda b: (b, 0)),   # samples
                pl.BlockSpec((M_TILE, N_HEAD), lambda b: (b, 0)),   # entropy (broadcast across lanes)
            ]),
        compiler_params=pltpu.CompilerParams(dimension_semantics=("parallel",)),
    )(x_slab, noise_slab, w, bias)

    samples = sample_out[:B].reshape(B, T, DIM_Z)
    if SAMPLE_REC == 1:
        entropies = ent_out[:B, 0]
    else:
        entropies = jnp.zeros((B,), jnp.float32)   # module returns tc.zeros(1) in this branch
    return samples, entropies


def poe_stacked_convolutions(x, noise, w, bias):
    """Module-equivalent forward for a single sequence x: [T, D] -> (sample [T, DIM_Z], entropy)."""
    s, e = poe_stacked_convolutions_batched(x[None], noise[None], w, bias)
    return s[0], e[0]


# ----------------------------- deterministic parameter init -----------------------------
def _init_conv(key, cin, cout, k):
    # torch Conv1d default init: U(-b, b), b = 1/sqrt(cin * k)
    kw, kb = jax.random.split(key)
    bound = 1.0 / math.sqrt(cin * k)
    w = jax.random.uniform(kw, (k, cin, cout), jnp.float32, -bound, bound)
    b = jax.random.uniform(kb, (1, cout), jnp.float32, -bound, bound)
    return w, b


def _init_encoder(key, dim_x):
    keys = jax.random.split(key, 4)
    w0, b0 = _init_conv(keys[0], dim_x, DIM_Z, KERNEL_SIZES[0])
    w1, b1 = _init_conv(keys[1], DIM_Z, DIM_Z, KERNEL_SIZES[1])
    w2, b2 = _init_conv(keys[2], DIM_Z, DIM_Z, KERNEL_SIZES[2])
    wl, bl = _init_conv(keys[3], dim_x, DIM_Z, KERNEL_SIZES[0])
    return (w0, b0, w1, b1, w2, b2, wl, bl)


# ----------------------------- pure-JAX reference (sequential convs, f32) -----------------------------
def _poe_ref(x, noise, pg, po, pp):
    g = x[:, :DIM_G]
    o = x[:, DIM_G:DIM_G + DIM_O]
    p = x[:, DIM_G + DIM_O:]
    mg, lg = _encode_ref(g, pg)
    mo, lo = _encode_ref(o, po)
    mp_, lp = _encode_ref(p, pp)
    w = 1.0 / 3.0
    mc = w * mg + w * mo + w * mp_
    vc = (w * (jnp.exp(2 * lg) + (mg - mc) ** 2)
          + w * (jnp.exp(2 * lo) + (mo - mc) ** 2)
          + w * (jnp.exp(2 * lp) + (mp_ - mc) ** 2))
    lsc = 0.5 * jnp.log(vc)
    sample = mc + jnp.exp(lsc) * noise
    ent = jnp.sum(lsc) / lsc.shape[0]
    return (sample if SAMPLE_REC == 1 else mc), ent


# ----------------------------- main -----------------------------
if __name__ == "__main__":
    key = jax.random.PRNGKey(0)
    k_x, k_noise, k_g, k_o, k_p = jax.random.split(key, 5)

    B = 16                                            # batch of independent sequences (grid = 2 steps)
    x = jax.random.normal(k_x, (B, T, D), jnp.float32)
    # TODO(synk): torch.randn inside get_sample has no in-kernel torch-RNG equivalent;
    # the gaussian noise is supplied deterministically as an input instead.
    noise = jax.random.normal(k_noise, (B, T, DIM_Z), jnp.float32)

    params_g = _init_encoder(k_g, DIM_G)
    params_o = _init_encoder(k_o, DIM_O)
    params_p = _init_encoder(k_p, DIM_P)

    # host-side precompute of the fused (composed) operator — done once per parameter set
    w_fused, bias_fused = build_fused_operator(params_g, params_o, params_p)

    samples, entropies = poe_stacked_convolutions_batched(x, noise, w_fused, bias_fused)
    jax.block_until_ready((samples, entropies))

    ref_samples, ref_entropies = jax.vmap(
        lambda xi, ni: _poe_ref(xi, ni, params_g, params_o, params_p))(x, noise)

    # tolerance covers bf16 matmul operands (f32 accumulation, exact f32 bias, f32 elementwise)
    np.testing.assert_allclose(np.asarray(samples), np.asarray(ref_samples),
                               rtol=4e-2, atol=4e-2)
    np.testing.assert_allclose(np.asarray(entropies), np.asarray(ref_entropies),
                               rtol=4e-2, atol=4e-2)

    # module-equivalent single-sequence API (forward() of the PyTorch module)
    s0, e0 = poe_stacked_convolutions(x[0], noise[0], w_fused, bias_fused)
    jax.block_until_ready((s0, e0))
    np.testing.assert_allclose(np.asarray(s0), np.asarray(ref_samples[0]), rtol=4e-2, atol=4e-2)
    np.testing.assert_allclose(np.asarray(e0), np.asarray(ref_entropies[0]), rtol=4e-2, atol=4e-2)

    print("KERNEL_OK")
</pallas_src>

<mosaic_0001>
module attributes {stable_mosaic.version = 11 : i64} {
  func.func @_poe_kernel(%arg0: i32, %arg1: memref<8x384xbf16, #tpu.memory_space<vmem>>, %arg2: memref<8x128xf32, #tpu.memory_space<vmem>>, %arg3: memref<384x768xbf16, #tpu.memory_space<vmem>>, %arg4: memref<8x768xf32, #tpu.memory_space<vmem>>, %arg5: memref<8x128xf32, #tpu.memory_space<vmem>>, %arg6: memref<8x128xf32, #tpu.memory_space<vmem>>) attributes {dimension_semantics = [#tpu.dimension_semantics<parallel>], iteration_bounds = array<i64: 2>, scalar_prefetch = 0 : i64, scratch_operands = 0 : i64, tpu.core_type = #tpu.core_type<tc>, window_params = [{transform_indices = @transform_0, window_bounds = array<i64: 8, 384>}, {transform_indices = @transform_1, window_bounds = array<i64: 8, 128>}, {pipeline_mode = #tpu.pipeline_mode<synchronous>, transform_indices = @transform_2, window_bounds = array<i64: 384, 768>}, {pipeline_mode = #tpu.pipeline_mode<synchronous>, transform_indices = @transform_3, window_bounds = array<i64: 8, 768>}, {transform_indices = @transform_4, window_bounds = array<i64: 8, 128>}, {transform_indices = @transform_5, window_bounds = array<i64: 8, 128>}]} {
    %c0 = arith.constant 0 : index
    %c0_0 = arith.constant 0 : index
    %0 = vector.load %arg1[%c0, %c0_0] : memref<8x384xbf16, #tpu.memory_space<vmem>>, vector<8x384xbf16>
    %c0_1 = arith.constant 0 : index
    %c0_2 = arith.constant 0 : index
    %1 = vector.load %arg3[%c0_1, %c0_2] : memref<384x768xbf16, #tpu.memory_space<vmem>>, vector<384x768xbf16>
    %cst = arith.constant dense<0.000000e+00> : vector<8x768xf32>
    %2 = tpu.matmul %0, %1, %cst {dimension_numbers = #tpu.dot_dimension_numbers<[1], [0], [0], [1], [0, 0, 1, 1], [], []>} : vector<8x384xbf16>, vector<384x768xbf16>, vector<8x768xf32> -> vector<8x768xf32>
    %c0_3 = arith.constant 0 : index
    %c0_4 = arith.constant 0 : index
    %3 = vector.load %arg4[%c0_3, %c0_4] : memref<8x768xf32, #tpu.memory_space<vmem>>, vector<8x768xf32>
    %4 = arith.addf %2, %3 : vector<8x768xf32>
    %5 = vector.extract_strided_slice %4 {offsets = [0, 0], sizes = [8, 128], strides = [1, 1]} : vector<8x768xf32> to vector<8x128xf32>
    %6 = vector.extract_strided_slice %4 {offsets = [0, 128], sizes = [8, 128], strides = [1, 1]} : vector<8x768xf32> to vector<8x128xf32>
    %7 = vector.extract_strided_slice %4 {offsets = [0, 256], sizes = [8, 128], strides = [1, 1]} : vector<8x768xf32> to vector<8x128xf32>
    %8 = vector.extract_strided_slice %4 {offsets = [0, 384], sizes = [8, 128], strides = [1, 1]} : vector<8x768xf32> to vector<8x128xf32>
    %9 = vector.extract_strided_slice %4 {offsets = [0, 512], sizes = [8, 128], strides = [1, 1]} : vector<8x768xf32> to vector<8x128xf32>
    %10 = vector.extract_strided_slice %4 {offsets = [0, 640], sizes = [8, 128], strides = [1, 1]} : vector<8x768xf32> to vector<8x128xf32>
    %11 = arith.addf %5, %6 : vector<8x128xf32>
    %12 = arith.addf %11, %7 : vector<8x128xf32>
    %cst_5 = arith.constant 0.333333343 : f32
    %13 = vector.broadcast %cst_5 : f32 to vector<8x128xf32>
    %14 = arith.mulf %12, %13 : vector<8x128xf32>
    %cst_6 = arith.constant 2.000000e+00 : f32
    %15 = vector.broadcast %cst_6 : f32 to vector<8x128xf32>
    %16 = arith.mulf %15, %8 : vector<8x128xf32>
    %17 = math.exp %16 : vector<8x128xf32>
    %18 = arith.subf %5, %14 : vector<8x128xf32>
    %19 = arith.mulf %18, %18 : vector<8x128xf32>
    %20 = arith.addf %17, %19 : vector<8x128xf32>
    %cst_7 = arith.constant 2.000000e+00 : f32
    %21 = vector.broadcast %cst_7 : f32 to vector<8x128xf32>
    %22 = arith.mulf %21, %9 : vector<8x128xf32>
    %23 = math.exp %22 : vector<8x128xf32>
    %24 = arith.addf %20, %23 : vector<8x128xf32>
    %25 = arith.subf %6, %14 : vector<8x128xf32>
    %26 = arith.mulf %25, %25 : vector<8x128xf32>
    %27 = arith.addf %24, %26 : vector<8x128xf32>
    %cst_8 = arith.constant 2.000000e+00 : f32
    %28 = vector.broadcast %cst_8 : f32 to vector<8x128xf32>
    %29 = arith.mulf %28, %10 : vector<8x128xf32>
    %30 = math.exp %29 : vector<8x128xf32>
    %31 = arith.addf %27, %30 : vector<8x128xf32>
    %32 = arith.subf %7, %14 : vector<8x128xf32>
    %33 = arith.mulf %32, %32 : vector<8x128xf32>
    %34 = arith.addf %31, %33 : vector<8x128xf32>
    %cst_9 = arith.constant 0.333333343 : f32
    %35 = vector.broadcast %cst_9 : f32 to vector<8x128xf32>
    %36 = arith.mulf %34, %35 : vector<8x128xf32>
    %37 = math.log %36 : vector<8x128xf32>
    %cst_10 = arith.constant 5.000000e-01 : f32
    %38 = vector.broadcast %cst_10 : f32 to vector<8x128xf32>
    %39 = arith.mulf %38, %37 : vector<8x128xf32>
    %40 = math.exp %39 : vector<8x128xf32>
    %c0_11 = arith.constant 0 : index
    %c0_12 = arith.constant 0 : index
    %41 = vector.load %arg2[%c0_11, %c0_12] : memref<8x128xf32, #tpu.memory_space<vmem>>, vector<8x128xf32>
    %42 = arith.mulf %40, %41 : vector<8x128xf32>
    %43 = arith.addf %14, %42 : vector<8x128xf32>
    %cst_13 = arith.constant dense<0.000000e+00> : vector<8xf32>
    %44 = vector.multi_reduction <add>, %39, %cst_13 [1] : vector<8x128xf32> to vector<8xf32>
    %45 = vector.shape_cast %44 : vector<8xf32> to vector<8x1xf32>
    %cst_14 = arith.constant 6.250000e-02 : f32
    %46 = vector.broadcast %cst_14 : f32 to vector<8x1xf32>
    %47 = arith.mulf %45, %46 : vector<8x1xf32>
    %c0_15 = arith.constant 0 : index
    %c0_16 = arith.constant 0 : index
    %48 = vector.load %arg5[%c0_15, %c0_16] : memref<8x128xf32, #tpu.memory_space<vmem>>, vector<8x128xf32>
    tpu.vector_store %arg5[%c0_15, %c0_16], %43 {strides = array<i32>} : memref<8x128xf32, #tpu.memory_space<vmem>>, vector<8x128xf32>,
    %49 = vector.shape_cast %47 : vector<8x1xf32> to vector<8x1xf32>
    %50 = vector.broadcast %49 : vector<8x1xf32> to vector<8x128xf32>
    %c0_17 = arith.constant 0 : index
    %c0_18 = arith.constant 0 : index
    %51 = vector.load %arg6[%c0_17, %c0_18] : memref<8x128xf32, #tpu.memory_space<vmem>>, vector<8x128xf32>
    tpu.vector_store %arg6[%c0_17, %c0_18], %50 {strides = array<i32>} : memref<8x128xf32, #tpu.memory_space<vmem>>, vector<8x128xf32>,
    return
  }
  func.func @transform_0(%arg0: i32) -> (i32, i32) {
    %c0_i32 = arith.constant 0 : i32
    %c0_i32_0 = arith.constant 0 : i32
    return %arg0, %c0_i32 : i32, i32
  }
  func.func @transform_1(%arg0: i32) -> (i32, i32) {
    %c0_i32 = arith.constant 0 : i32
    %c0_i32_0 = arith.constant 0 : i32
    return %arg0, %c0_i32 : i32, i32
  }
  func.func @transform_2(%arg0: i32) -> (i32, i32) {
    %c0_i32 = arith.constant 0 : i32
    %c0_i32_0 = arith.constant 0 : i32
    %c0_i32_1 = arith.constant 0 : i32
    return %c0_i32, %c0_i32_0 : i32, i32
  }
  func.func @transform_3(%arg0: i32) -> (i32, i32) {
    %c0_i32 = arith.constant 0 : i32
    %c0_i32_0 = arith.constant 0 : i32
    %c0_i32_1 = arith.constant 0 : i32
    return %c0_i32, %c0_i32_0 : i32, i32
  }
  func.func @transform_4(%arg0: i32) -> (i32, i32) {
    %c0_i32 = arith.constant 0 : i32
    %c0_i32_0 = arith.constant 0 : i32
    return %arg0, %c0_i32 : i32, i32
  }
  func.func @transform_5(%arg0: i32) -> (i32, i32) {
    %c0_i32 = arith.constant 0 : i32
    %c0_i32_0 = arith.constant 0 : i32
    return %arg0, %c0_i32 : i32, i32
  }
}

</mosaic_0001>

<llo_original>
// kernel: tpu_custom_call.1
$region0: #{tpu_custom_call.1}
  #allocation0 [shape = 'u32[]', space=smem, size = 0x4, offset = 0x4, fixed_abs, tag = 'smem constant byte address 0x4 - core index']
  #allocation1 [shape = 'u32[144,128]{1,0:T(1,128)}', space=vmem, size = 0x12000, scoped, tag = 'internal scratch']
  %s0 = inlined_call_operand.hbm [shape: bf16[16,384], index: 0, kind: input, shape index: {}]
  %s1 = inlined_call_operand.hbm [shape: f32[16,128], index: 1, kind: input, shape index: {}]
  %s2 = inlined_call_operand.hbm [shape: bf16[384,768], index: 2, kind: input, shape index: {}]
  %s3 = inlined_call_operand.hbm [shape: f32[8,768], index: 3, kind: input, shape index: {}]
  %s4 = inlined_call_operand.hbm [shape: f32[16,128], index: 4, kind: output, shape index: {0}]
  %s5 = inlined_call_operand.hbm [shape: f32[16,128], index: 5, kind: output, shape index: {1}]
  %6 = xla_tuple %s4, %s5
  %s7 = sld [smem:[#allocation0]]
  $region73: #{tpu_custom_call.1} parent=0
    _
  %s9 = ssub.s32 1, %s7
  %s10 = scalar_select 0, %s9, %s7
  $region1: #{tpu_custom_call.1} parent=0
    #allocation2 [shape = 'u8[12288]{0}', space=vmem, size = 0x3000, scoped, tag = 'input window, operand 0']
    #allocation3 [shape = 's32[2]{0}', space=sflag, size = 0x8, scoped, tag = 'scoped memory for tpu_custom_call.1']
    #allocation4 [shape = 's32[2]{0}', space=sflag, size = 0x8, scoped, tag = 'scoped memory for tpu_custom_call.1']
    #allocation5 [shape = 'u8[8192]{0}', space=vmem, size = 0x2000, scoped, tag = 'input window, operand 1']
    #allocation6 [shape = 's32[2]{0}', space=sflag, size = 0x8, scoped, tag = 'scoped memory for tpu_custom_call.1']
    #allocation7 [shape = 'u8[589824]{0}', space=vmem, size = 0x90000, scoped, tag = 'input window, operand 2, single buffered']
    #allocation8 [shape = 'u8[24576]{0}', space=vmem, size = 0x6000, scoped, tag = 'input window, operand 3, single buffered']
    #allocation9 [shape = 's32[1]{0}', space=sflag, size = 0x4, scoped, tag = 'scoped memory for tpu_custom_call.1']
    #allocation10 [shape = 'u8[8192]{0}', space=vmem, size = 0x2000, scoped, tag = 'output window, operand 0']
    #allocation11 [shape = 'u8[8192]{0}', space=vmem, size = 0x2000, scoped, tag = 'output window, operand 1']
    #allocation12 [shape = 's32[2]{0}', space=sflag, size = 0x8, scoped, tag = 'scoped memory for tpu_custom_call.1']
    %11 = vsyncpa [#allocation3], 0
    %s12 = scalar_lea.sflag [#allocation3], 1
    %13 = vsyncpa %s12, 0
    %14 = vsyncpa [#allocation6], 0
    %s15 = scalar_lea.sflag [#allocation6], 1
    %16 = vsyncpa %s15, 0
    %17 = vsyncpa [#allocation9], 0
    %18 = vsyncpa [#allocation4], 0
    %s19 = scalar_lea.sflag [#allocation4], 1
    %20 = vsyncpa %s19, 0
    %21 = vsyncpa [#allocation12], 0
    %s22 = scalar_lea.sflag [#allocation12], 1
    %23 = vsyncpa %s22, 0
    loop: start=0, step=1, limit=4
    $region2: #{tpu_custom_call.1} parent=1 // loop_pre_header
      _
    $region3: #{tpu_custom_call.1} parent=1 // loop_header
      %s25 = sphi 0, %s29
      %p26 = scmp.ge.s32.totalorder %s25, 4
      %s35 = sphi 0, %s37
      %s38 = sphi 0, %s35
      %s39 = sphi 0, %s38
      %s55 = sphi 0, %s39
      %s61 = sphi 0, %s63
      %s64 = sphi 0, %s61
      %s65 = sphi 0, %s64
      %s81 = sphi 0, %s65
      %s85 = sphi 0, %s85
      %s87 = sphi 0, %s85
      %s88 = sphi 0, %s87
      %s102 = sphi 0, %s88
      %s106 = sphi 0, %s106
      %s108 = sphi 0, %s106
      %s109 = sphi 0, %s108
      %s123 = sphi 0, %s109
      %s129 = sphi 0, %s131
      %s132 = sphi 0, %s129
      %s133 = sphi 0, %s132
      %s149 = sphi 0, %s133
      %s155 = sphi 0, %s157
      %s158 = sphi 0, %s155
      %s159 = sphi 0, %s158
      %s175 = sphi 0, %s159
    $region4: #{tpu_custom_call.1} parent=1 // loop_header_branch
      %28 = sbr.rel (%p26) target = $region8
    $region5: #{tpu_custom_call.1} parent=1 // loop_body
      %s30 = ssub.s32 %s25, 1
      %s31 = ssub.s32 %s25, 2
      %s32 = sadd.s32 %s25, 1
      %s33 = ssub.s32 %s25, %s32
      %p34 = scmp.eq.s32.totalorder %s33, 0
      %s36 = sadd.s32 %s35, 1
      %s37 = scalar_select %p34, %s35, %s36
      %p40 = pneg %p34
      %p41 = scmp.eq.s32.totalorder %s25, 1
      %p42 = por %p40, %p41
      %p43 = scmp.ne.s32.totalorder %s35, %s38
      %p44 = scmp.eq.s32.totalorder %s25, 0
      %p45 = por %p43, %p44
      %p46 = scmp.ne.s32.totalorder %s35, %s38
      %p47 = scmp.eq.s32.totalorder %s30, 1
      %p48 = por %p46, %p47
      %p49 = scmp.ne.s32.totalorder %s38, %s39
      %p50 = scmp.eq.s32.totalorder %s30, 0
      %p51 = por %p49, %p50
      %p52 = scmp.ne.s32.totalorder %s38, %s39
      %p53 = scmp.eq.s32.totalorder %s31, 1
      %p54 = por %p52, %p53
      %p56 = scmp.ne.s32.totalorder %s39, %s55
      %p57 = scmp.eq.s32.totalorder %s31, 0
      %p58 = por %p56, %p57
      %s59 = ssub.s32 %s25, %s32
      %p60 = scmp.eq.s32.totalorder %s59, 0
      %s62 = sadd.s32 %s61, 1
      %s63 = scalar_select %p60, %s61, %s62
      %p66 = pneg %p60
      %p67 = scmp.eq.s32.totalorder %s25, 1
      %p68 = por %p66, %p67
      %p69 = scmp.ne.s32.totalorder %s61, %s64
      %p70 = scmp.eq.s32.totalorder %s25, 0
      %p71 = por %p69, %p70
      %p72 = scmp.ne.s32.totalorder %s61, %s64
      %p73 = scmp.eq.s32.totalorder %s30, 1
      %p74 = por %p72, %p73
      %p75 = scmp.ne.s32.totalorder %s64, %s65
      %p76 = scmp.eq.s32.totalorder %s30, 0
      %p77 = por %p75, %p76
      %p78 = scmp.ne.s32.totalorder %s64, %s65
      %p79 = scmp.eq.s32.totalorder %s31, 1
      %p80 = por %p78, %p79
      %p82 = scmp.ne.s32.totalorder %s65, %s81
      %p83 = scmp.eq.s32.totalorder %s31, 0
      %p84 = por %p82, %p83
      %s86 = sadd.s32 %s85, 1
      %p89 = scmp.eq.s32.totalorder %s25, 1
      %p90 = scmp.ne.s32.totalorder %s85, %s87
      %p91 = scmp.eq.s32.totalorder %s25, 0
      %p92 = por %p90, %p91
      %p93 = scmp.ne.s32.totalorder %s85, %s87
      %p94 = scmp.eq.s32.totalorder %s30, 1
      %p95 = por %p93, %p94
      %p96 = scmp.ne.s32.totalorder %s87, %s88
      %p97 = scmp.eq.s32.totalorder %s30, 0
      %p98 = por %p96, %p97
      %p99 = scmp.ne.s32.totalorder %s87, %s88
      %p100 = scmp.eq.s32.totalorder %s31, 1
      %p101 = por %p99, %p100
      %p103 = scmp.ne.s32.totalorder %s88, %s102
      %p104 = scmp.eq.s32.totalorder %s31, 0
      %p105 = por %p103, %p104
      %s107 = sadd.s32 %s106, 1
      %p110 = scmp.eq.s32.totalorder %s25, 1
      %p111 = scmp.ne.s32.totalorder %s106, %s108
      %p112 = scmp.eq.s32.totalorder %s25, 0
      %p113 = por %p111, %p112
      %p114 = scmp.ne.s32.totalorder %s106, %s108
      %p115 = scmp.eq.s32.totalorder %s30, 1
      %p116 = por %p114, %p115
      %p117 = scmp.ne.s32.totalorder %s108, %s109
      %p118 = scmp.eq.s32.totalorder %s30, 0
      %p119 = por %p117, %p118
      %p120 = scmp.ne.s32.totalorder %s108, %s109
      %p121 = scmp.eq.s32.totalorder %s31, 1
      %p122 = por %p120, %p121
      %p124 = scmp.ne.s32.totalorder %s109, %s123
      %p125 = scmp.eq.s32.totalorder %s31, 0
      %p126 = por %p124, %p125
      %s127 = ssub.s32 %s25, %s32
      %p128 = scmp.eq.s32.totalorder %s127, 0
      %s130 = sadd.s32 %s129, 1
      %s131 = scalar_select %p128, %s129, %s130
      %p134 = pneg %p128
      %p135 = scmp.eq.s32.totalorder %s25, 1
      %p136 = por %p134, %p135
      %p137 = scmp.ne.s32.totalorder %s129, %s132
      %p138 = scmp.eq.s32.totalorder %s25, 0
      %p139 = por %p137, %p138
      %p140 = scmp.ne.s32.totalorder %s129, %s132
      %p141 = scmp.eq.s32.totalorder %s30, 1
      %p142 = por %p140, %p141
      %p143 = scmp.ne.s32.totalorder %s132, %s133
      %p144 = scmp.eq.s32.totalorder %s30, 0
      %p145 = por %p143, %p144
      %p146 = scmp.ne.s32.totalorder %s132, %s133
      %p147 = scmp.eq.s32.totalorder %s31, 1
      %p148 = por %p146, %p147
      %p150 = scmp.ne.s32.totalorder %s133, %s149
      %p151 = scmp.eq.s32.totalorder %s31, 0
      %p152 = por %p150, %p151
      %s153 = ssub.s32 %s25, %s32
      %p154 = scmp.eq.s32.totalorder %s153, 0
      %s156 = sadd.s32 %s155, 1
      %s157 = scalar_select %p154, %s155, %s156
      %p160 = pneg %p154
      %p161 = scmp.eq.s32.totalorder %s25, 1
      %p162 = por %p160, %p161
      %p163 = scmp.ne.s32.totalorder %s155, %s158
      %p164 = scmp.eq.s32.totalorder %s25, 0
      %p165 = por %p163, %p164
      %p166 = scmp.ne.s32.totalorder %s155, %s158
      %p167 = scmp.eq.s32.totalorder %s30, 1
      %p168 = por %p166, %p167
      %p169 = scmp.ne.s32.totalorder %s158, %s159
      %p170 = scmp.eq.s32.totalorder %s30, 0
      %p171 = por %p169, %p170
      %p172 = scmp.ne.s32.totalorder %s158, %s159
      %p173 = scmp.eq.s32.totalorder %s31, 1
      %p174 = por %p172, %p173
      %p176 = scmp.ne.s32.totalorder %s159, %s175
      %p177 = scmp.eq.s32.totalorder %s31, 0
      %p178 = por %p176, %p177
      %p179 = scmp.le.s32.totalorder 1, %s25
      %p180 = scmp.lt.s32.totalorder %s25, 3
      %p181 = pnand %p179, %p180
      %p182 = pneg %p181
      // Predicated region
      $region9: #{tpu_custom_call.1} parent=5 // pred_check
        _
      $region10: #{tpu_custom_call.1} parent=5 // pred_check_branch
        %184 = sbr.rel (%p181) target = $region12
      $region11: #{tpu_custom_call.1} parent=5 // pred_region
        %s185 = ssub.s32 %s25, 1
        // Predicated region
        $region13: #{tpu_custom_call.1} parent=11 // pred_check
          %p186 = pneg %p98
        $region14: #{tpu_custom_call.1} parent=11 // pred_check_branch
          %188 = sbr.rel (%p186) target = $region16
        $region15: #{tpu_custom_call.1} parent=11 // pred_region
          %s190 = ssub.s32 18432, 18432
          %191 = vsyncadd [#allocation6], %s190
          %s192 = sshll.u32 [#allocation7], 4
          %s193 = int_to_ptr.vmem [resolvable:$true] %s192
          %198 = dma.hbm_to_vmem [thread:$0]  %s2, 18432, %s193, [#allocation6], 384, 384, 24
        $region16: #{tpu_custom_call.1} parent=11 // pred_fallthru
          _
        // Predicated region
        $region17: #{tpu_custom_call.1} parent=11 // pred_check
          %p199 = pneg %p119
        $region18: #{tpu_custom_call.1} parent=11 // pred_check_branch
          %201 = sbr.rel (%p199) target = $region20
        $region19: #{tpu_custom_call.1} parent=11 // pred_region
          %s203 = ssub.s32 768, 768
          %204 = vsyncadd [#allocation9], %s203
          %s206 = sshll.u32 [#allocation8], 4
          %s207 = int_to_ptr.vmem [resolvable:$true] %s206
          %209 = dma.hbm_to_vmem [thread:$0]  %s3, 768, %s207, [#allocation9]
        $region20: #{tpu_custom_call.1} parent=11 // pred_fallthru
          _
      $region12: #{tpu_custom_call.1} parent=5 // pred_fallthru
        _
      %p210 = scmp.lt.s32.totalorder %s25, 2
      // Predicated region
      $region21: #{tpu_custom_call.1} parent=5 // pred_check
        %p211 = pneg %p210
      $region22: #{tpu_custom_call.1} parent=5 // pred_check_branch
        %213 = sbr.rel (%p211) target = $region24
      $region23: #{tpu_custom_call.1} parent=5 // pred_region
        // Predicated region
        $region25: #{tpu_custom_call.1} parent=23 // pred_check
          %p214 = pneg %p45
        $region26: #{tpu_custom_call.1} parent=23 // pred_check_branch
          %216 = sbr.rel (%p214) target = $region28
        $region27: #{tpu_custom_call.1} parent=23 // pred_region
          %s217 = sand.u32 %s35, 1
          %s218 = scalar_lea.sflag [#allocation3], %s217
          %s219 = sand.u32 %s35, 1
          %s220 = smul.addr %s219, 12
          %s221 = scalar_lea.vmem [#allocation2], %s220
          %s223 = ssub.s32 192, 192
          %224 = vsyncadd %s218, %s223
          %s225 = smul.addr %s25, 3
          %s226 = smul.addr %s225, 64
          %s227 = scalar_lea.hbm %s0, %s226
          %s229 = sshll.u32 %s221, 4
          %s230 = int_to_ptr.vmem [resolvable:$true] %s229
          %232 = dma.hbm_to_vmem [thread:$0]  %s227, 192, %s230, %s218
        $region28: #{tpu_custom_call.1} parent=23 // pred_fallthru
          _
        // Predicated region
        $region29: #{tpu_custom_call.1} parent=23 // pred_check
          %p233 = pneg %p71
        $region30: #{tpu_custom_call.1} parent=23 // pred_check_branch
          %235 = sbr.rel (%p233) target = $region32
        $region31: #{tpu_custom_call.1} parent=23 // pred_region
          %s236 = sand.u32 %s25, 1
          %s237 = scalar_lea.sflag [#allocation6], %s236
          %s238 = sand.u32 %s61, 1
          %s239 = smul.addr %s238, 8
          %s240 = scalar_lea.vmem [#allocation5], %s239
          %s242 = ssub.s32 128, 128
          %243 = vsyncadd %s237, %s242
          %s244 = smul.addr %s25, 128
          %s245 = scalar_lea.hbm %s1, %s244
          %s247 = sshll.u32 %s240, 4
          %s248 = int_to_ptr.vmem [resolvable:$true] %s247
          %250 = dma.hbm_to_vmem [thread:$0]  %s245, 128, %s248, %s237
        $region32: #{tpu_custom_call.1} parent=23 // pred_fallthru
          _
      $region24: #{tpu_custom_call.1} parent=5 // pred_fallthru
        _
      %p251 = scmp.le.s32.totalorder 1, %s25
      %p252 = scmp.lt.s32.totalorder %s25, 3
      %p253 = pnand %p251, %p252
      %p254 = pneg %p253
      // Predicated region
      $region33: #{tpu_custom_call.1} parent=5 // pred_check
        _
      $region34: #{tpu_custom_call.1} parent=5 // pred_check_branch
        %256 = sbr.rel (%p253) target = $region36
      $region35: #{tpu_custom_call.1} parent=5 // pred_region
        %s257 = ssub.s32 %s25, 1
        %s258 = sand.u32 %s38, 1
        %s259 = scalar_lea.sflag [#allocation3], %s258
        %s260 = sand.u32 %s38, 1
        %s261 = smul.addr %s260, 12
        %s262 = scalar_lea.vmem [#allocation2], %s261
        // Predicated region
        $region37: #{tpu_custom_call.1} parent=35 // pred_check
          %p263 = pneg %p51
        $region38: #{tpu_custom_call.1} parent=35 // pred_check_branch
          %265 = sbr.rel (%p263) target = $region40
        $region39: #{tpu_custom_call.1} parent=35 // pred_region
          %266 = dma.done %s259, 192
        $region40: #{tpu_custom_call.1} parent=35 // pred_fallthru
          _
        %s267 = sand.u32 %s30, 1
        %s268 = scalar_lea.sflag [#allocation6], %s267
        %s269 = sand.u32 %s64, 1
        %s270 = smul.addr %s269, 8
        %s271 = scalar_lea.vmem [#allocation5], %s270
        // Predicated region
        $region41: #{tpu_custom_call.1} parent=35 // pred_check
          %p272 = pneg %p77
        $region42: #{tpu_custom_call.1} parent=35 // pred_check_branch
          %274 = sbr.rel (%p272) target = $region44
        $region43: #{tpu_custom_call.1} parent=35 // pred_region
          %275 = dma.done %s268, 128
        $region44: #{tpu_custom_call.1} parent=35 // pred_fallthru
          _
        // Predicated region
        $region45: #{tpu_custom_call.1} parent=35 // pred_check
          %p276 = pneg %p98
        $region46: #{tpu_custom_call.1} parent=35 // pred_check_branch
          %278 = sbr.rel (%p276) target = $region48
        $region47: #{tpu_custom_call.1} parent=35 // pred_region
          %279 = dma.done [#allocation6], 18432
        $region48: #{tpu_custom_call.1} parent=35 // pred_fallthru
          _
        // Predicated region
        $region49: #{tpu_custom_call.1} parent=35 // pred_check
          %p280 = pneg %p119
        $region50: #{tpu_custom_call.1} parent=35 // pred_check_branch
          %282 = sbr.rel (%p280) target = $region52
        $region51: #{tpu_custom_call.1} parent=35 // pred_region
          %283 = dma.done [#allocation9], 768
        $region52: #{tpu_custom_call.1} parent=35 // pred_fallthru
          _
        %s284 = sand.u32 %s38, 1
        %s285 = scalar_lea.sflag [#allocation3], %s284
        %s286 = sand.u32 %s38, 1
        %s287 = smul.addr %s286, 12
        %s288 = scalar_lea.vmem [#allocation2], %s287
        %p289 = pneg %p51
        %p290 = pneg %p48
        %s291 = sand.u32 %s30, 1
        %s292 = scalar_lea.sflag [#allocation6], %s291
        %s293 = sand.u32 %s64, 1
        %s294 = smul.addr %s293, 8
        %s295 = scalar_lea.vmem [#allocation5], %s294
        %p296 = pneg %p77
        %p297 = pneg %p74
        %p298 = pneg %p98
        %p299 = pneg %p95
        %p300 = pneg %p119
        %p301 = pneg %p116
        %p302 = pneg %p145
        %p303 = pneg %p142
        %s304 = sand.u32 %s132, 1
        %s305 = scalar_lea.sflag [#allocation4], %s304
        %s306 = sand.u32 %s132, 1
        %s307 = smul.addr %s306, 8
        %s308 = scalar_lea.vmem [#allocation10], %s307
        %p309 = pneg %p171
        %p310 = pneg %p168
        %s311 = sand.u32 %s158, 1
        %s312 = scalar_lea.sflag [#allocation12], %s311
        %s313 = sand.u32 %s158, 1
        %s314 = smul.addr %s313, 8
        %s315 = scalar_lea.vmem [#allocation11], %s314
        %v317 = vld [vmem:[%s262] sm:$0xff]
        %v318 = vld [vmem:[%s262 + $0x8] sm:$0xf]
        %v319 = vld [vmem:[#allocation7] sm:$0xff]
        %v320 = vld [vmem:[#allocation7 + $0x8] sm:$0xff]
        %v321 = vld [vmem:[#allocation7 + $0x10] sm:$0xff]
        %v322 = vld [vmem:[#allocation7 + $0x18] sm:$0xff]
        %v323 = vld [vmem:[#allocation7 + $0x20] sm:$0xff]
        %v324 = vld [vmem:[#allocation7 + $0x28] sm:$0xff]
        %v325 = vld [vmem:[#allocation7 + $0x30] sm:$0xff]
        %v326 = vld [vmem:[#allocation7 + $0x38] sm:$0xff]
        %v327 = vld [vmem:[#allocation7 + $0x40] sm:$0xff]
        %v328 = vld [vmem:[#allocation7 + $0x48] sm:$0xff]
        %v329 = vld [vmem:[#allocation7 + $0x50] sm:$0xff]
        %v330 = vld [vmem:[#allocation7 + $0x58] sm:$0xff]
        %v331 = vld [vmem:[#allocation7 + $0x60] sm:$0xff]
        %v332 = vld [vmem:[#allocation7 + $0x68] sm:$0xff]
        %v333 = vld [vmem:[#allocation7 + $0x70] sm:$0xff]
        %v334 = vld [vmem:[#allocation7 + $0x78] sm:$0xff]
        %v335 = vld [vmem:[#allocation7 + $0x80] sm:$0xff]
        %v336 = vld [vmem:[#allocation7 + $0x88] sm:$0xff]
        %v337 = vld [vmem:[#allocation7 + $0x90] sm:$0xff]
        %v338 = vld [vmem:[#allocation7 + $0x98] sm:$0xff]
        %v339 = vld [vmem:[#allocation7 + $0xa0] sm:$0xff]
        %v340 = vld [vmem:[#allocation7 + $0xa8] sm:$0xff]
        %v341 = vld [vmem:[#allocation7 + $0xb0] sm:$0xff]
        %v342 = vld [vmem:[#allocation7 + $0xb8] sm:$0xff]
        %v343 = vld [vmem:[#allocation7 + $0xc0] sm:$0xff]
        %v344 = vld [vmem:[#allocation7 + $0xc8] sm:$0xff]
        %v345 = vld [vmem:[#allocation7 + $0xd0] sm:$0xff]
        %v346 = vld [vmem:[#allocation7 + $0xd8] sm:$0xff]
        %v347 = vld [vmem:[#allocation7 + $0xe0] sm:$0xff]
        %v348 = vld [vmem:[#allocation7 + $0xe8] sm:$0xff]
        %v349 = vld [vmem:[#allocation7 + $0xf0] sm:$0xff]
        %v350 = vld [vmem:[#allocation7 + $0xf8] sm:$0xff]
        %v351 = vld [vmem:[#allocation7 + $0x100] sm:$0xff]
        %v352 = vld [vmem:[#allocation7 + $0x108] sm:$0xff]
        %v353 = vld [vmem:[#allocation7 + $0x110] sm:$0xff]
        %v354 = vld [vmem:[#allocation7 + $0x118] sm:$0xff]
        %v355 = vld [vmem:[#allocation7 + $0x120] sm:$0xff]
        %v356 = vld [vmem:[#allocation7 + $0x128] sm:$0xff]
        %v357 = vld [vmem:[#allocation7 + $0x130] sm:$0xff]
        %v358 = vld [vmem:[#allocation7 + $0x138] sm:$0xff]
        %v359 = vld [vmem:[#allocation7 + $0x140] sm:$0xff]
        %v360 = vld [vmem:[#allocation7 + $0x148] sm:$0xff]
        %v361 = vld [vmem:[#allocation7 + $0x150] sm:$0xff]
        %v362 = vld [vmem:[#allocation7 + $0x158] sm:$0xff]
        %v363 = vld [vmem:[#allocation7 + $0x160] sm:$0xff]
        %v364 = vld [vmem:[#allocation7 + $0x168] sm:$0xff]
        %v365 = vld [vmem:[#allocation7 + $0x170] sm:$0xff]
        %v366 = vld [vmem:[#allocation7 + $0x178] sm:$0xff]
        %v367 = vld [vmem:[#allocation7 + $0x180] sm:$0xff]
        %v368 = vld [vmem:[#allocation7 + $0x188] sm:$0xff]
        %v369 = vld [vmem:[#allocation7 + $0x190] sm:$0xff]
        %v370 = vld [vmem:[#allocation7 + $0x198] sm:$0xff]
        %v371 = vld [vmem:[#allocation7 + $0x1a0] sm:$0xff]
        %v372 = vld [vmem:[#allocation7 + $0x1a8] sm:$0xff]
        %v373 = vld [vmem:[#allocation7 + $0x1b0] sm:$0xff]
        %v374 = vld [vmem:[#allocation7 + $0x1b8] sm:$0xff]
        %v375 = vld [vmem:[#allocation7 + $0x1c0] sm:$0xff]
        %v376 = vld [vmem:[#allocation7 + $0x1c8] sm:$0xff]
        %v377 = vld [vmem:[#allocation7 + $0x1d0] sm:$0xff]
        %v378 = vld [vmem:[#allocation7 + $0x1d8] sm:$0xff]
        %v379 = vld [vmem:[#allocation7 + $0x1e0] sm:$0xff]
        %v380 = vld [vmem:[#allocation7 + $0x1e8] sm:$0xff]
        %v381 = vld [vmem:[#allocation7 + $0x1f0] sm:$0xff]
        %v382 = vld [vmem:[#allocation7 + $0x1f8] sm:$0xff]
        %v383 = vld [vmem:[#allocation7 + $0x200] sm:$0xff]
        %v384 = vld [vmem:[#allocation7 + $0x208] sm:$0xff]
        %v385 = vld [vmem:[#allocation7 + $0x210] sm:$0xff]
        %v386 = vld [vmem:[#allocation7 + $0x218] sm:$0xff]
        %v387 = vld [vmem:[#allocation7 + $0x220] sm:$0xff]
        %v388 = vld [vmem:[#allocation7 + $0x228] sm:$0xff]
        %v389 = vld [vmem:[#allocation7 + $0x230] sm:$0xff]
        %v390 = vld [vmem:[#allocation7 + $0x238] sm:$0xff]
        %v391 = vld [vmem:[#allocation7 + $0x240] sm:$0xff]
        %v392 = vld [vmem:[#allocation7 + $0x248] sm:$0xff]
        %v393 = vld [vmem:[#allocation7 + $0x250] sm:$0xff]
        %v394 = vld [vmem:[#allocation7 + $0x258] sm:$0xff]
        %v395 = vld [vmem:[#allocation7 + $0x260] sm:$0xff]
        %v396 = vld [vmem:[#allocation7 + $0x268] sm:$0xff]
        %v397 = vld [vmem:[#allocation7 + $0x270] sm:$0xff]
        %v398 = vld [vmem:[#allocation7 + $0x278] sm:$0xff]
        %v399 = vld [vmem:[#allocation7 + $0x280] sm:$0xff]
        %v400 = vld [vmem:[#allocation7 + $0x288] sm:$0xff]
        %v401 = vld [vmem:[#allocation7 + $0x290] sm:$0xff]
        %v402 = vld [vmem:[#allocation7 + $0x298] sm:$0xff]
        %v403 = vld [vmem:[#allocation7 + $0x2a0] sm:$0xff]
        %v404 = vld [vmem:[#allocation7 + $0x2a8] sm:$0xff]
        %v405 = vld [vmem:[#allocation7 + $0x2b0] sm:$0xff]
        %v406 = vld [vmem:[#allocation7 + $0x2b8] sm:$0xff]
        %v407 = vld [vmem:[#allocation7 + $0x2c0] sm:$0xff]
        %v408 = vld [vmem:[#allocation7 + $0x2c8] sm:$0xff]
        %v409 = vld [vmem:[#allocation7 + $0x2d0] sm:$0xff]
        %v410 = vld [vmem:[#allocation7 + $0x2d8] sm:$0xff]
        %v411 = vld [vmem:[#allocation7 + $0x2e0] sm:$0xff]
        %v412 = vld [vmem:[#allocation7 + $0x2e8] sm:$0xff]
        %v413 = vld [vmem:[#allocation7 + $0x2f0] sm:$0xff]
        %v414 = vld [vmem:[#allocation7 + $0x2f8] sm:$0xff]
        %v415 = vld [vmem:[#allocation7 + $0x300] sm:$0xff]
        %v416 = vld [vmem:[#allocation7 + $0x308] sm:$0xff]
        %v417 = vld [vmem:[#allocation7 + $0x310] sm:$0xff]
        %v418 = vld [vmem:[#allocation7 + $0x318] sm:$0xff]
        %v419 = vld [vmem:[#allocation7 + $0x320] sm:$0xff]
        %v420 = vld [vmem:[#allocation7 + $0x328] sm:$0xff]
        %v421 = vld [vmem:[#allocation7 + $0x330] sm:$0xff]
        %v422 = vld [vmem:[#allocation7 + $0x338] sm:$0xff]
        %v423 = vld [vmem:[#allocation7 + $0x340] sm:$0xff]
        %v424 = vld [vmem:[#allocation7 + $0x348] sm:$0xff]
        %v425 = vld [vmem:[#allocation7 + $0x350] sm:$0xff]
        %v426 = vld [vmem:[#allocation7 + $0x358] sm:$0xff]
        %v427 = vld [vmem:[#allocation7 + $0x360] sm:$0xff]
        %v428 = vld [vmem:[#allocation7 + $0x368] sm:$0xff]
        %v429 = vld [vmem:[#allocation7 + $0x370] sm:$0xff]
        %v430 = vld [vmem:[#allocation7 + $0x378] sm:$0xff]
        %v431 = vld [vmem:[#allocation7 + $0x380] sm:$0xff]
        %v432 = vld [vmem:[#allocation7 + $0x388] sm:$0xff]
        %v433 = vld [vmem:[#allocation7 + $0x390] sm:$0xff]
        %v434 = vld [vmem:[#allocation7 + $0x398] sm:$0xff]
        %v435 = vld [vmem:[#allocation7 + $0x3a0] sm:$0xff]
        %v436 = vld [vmem:[#allocation7 + $0x3a8] sm:$0xff]
        %v437 = vld [vmem:[#allocation7 + $0x3b0] sm:$0xff]
        %v438 = vld [vmem:[#allocation7 + $0x3b8] sm:$0xff]
        %v439 = vld [vmem:[#allocation7 + $0x3c0] sm:$0xff]
        %v440 = vld [vmem:[#allocation7 + $0x3c8] sm:$0xff]
        %v441 = vld [vmem:[#allocation7 + $0x3d0] sm:$0xff]
        %v442 = vld [vmem:[#allocation7 + $0x3d8] sm:$0xff]
        %v443 = vld [vmem:[#allocation7 + $0x3e0] sm:$0xff]
        %v444 = vld [vmem:[#allocation7 + $0x3e8] sm:$0xff]
        %v445 = vld [vmem:[#allocation7 + $0x3f0] sm:$0xff]
        %v446 = vld [vmem:[#allocation7 + $0x3f8] sm:$0xff]
        %v447 = vld [vmem:[#allocation7 + $0x400] sm:$0xff]
        %v448 = vld [vmem:[#allocation7 + $0x408] sm:$0xff]
        %v449 = vld [vmem:[#allocation7 + $0x410] sm:$0xff]
        %v450 = vld [vmem:[#allocation7 + $0x418] sm:$0xff]
        %v451 = vld [vmem:[#allocation7 + $0x420] sm:$0xff]
        %v452 = vld [vmem:[#allocation7 + $0x428] sm:$0xff]
        %v453 = vld [vmem:[#allocation7 + $0x430] sm:$0xff]
        %v454 = vld [vmem:[#allocation7 + $0x438] sm:$0xff]
        %v455 = vld [vmem:[#allocation7 + $0x440] sm:$0xff]
        %v456 = vld [vmem:[#allocation7 + $0x448] sm:$0xff]
        %v457 = vld [vmem:[#allocation7 + $0x450] sm:$0xff]
        %v458 = vld [vmem:[#allocation7 + $0x458] sm:$0xff]
        %v459 = vld [vmem:[#allocation7 + $0x460] sm:$0xff]
        %v460 = vld [vmem:[#allocation7 + $0x468] sm:$0xff]
        %v461 = vld [vmem:[#allocation7 + $0x470] sm:$0xff]
        %v462 = vld [vmem:[#allocation7 + $0x478] sm:$0xff]
        %v463 = vld [vmem:[#allocation8] sm:$0xff]
        %v464 = vld [vmem:[#allocation8 + $0x8] sm:$0xff]
        %v465 = vld [vmem:[#allocation8 + $0x10] sm:$0xff]
        %v466 = vld [vmem:[#allocation8 + $0x18] sm:$0xff]
        %v467 = vld [vmem:[#allocation8 + $0x20] sm:$0xff]
        %v468 = vld [vmem:[#allocation8 + $0x28] sm:$0xff]
        %v471 = vunpack.c.l.b16 %v317
        %v472 = vunpack.c.h.b16 %v317
        %v473 = vunpack.c.l.b16 %v318
        %v474 = vpack.c.b16 %v471, %v471
        %v475 = vpack.c.b16 %v472, %v472
        %v476 = vpack.c.b16 %v473, %v473
        %v624 = vunpack.c.l.b16 %v319
        %v625 = vunpack.c.h.b16 %v319
        %v626 = vunpack.c.l.b16 %v320
        %v627 = vunpack.c.h.b16 %v320
        %v628 = vunpack.c.l.b16 %v321
        %v629 = vunpack.c.h.b16 %v321
        %v630 = vunpack.c.l.b16 %v322
        %v631 = vunpack.c.h.b16 %v322
        %v632 = vunpack.c.l.b16 %v323
        %v633 = vunpack.c.h.b16 %v323
        %v634 = vunpack.c.l.b16 %v324
        %v635 = vunpack.c.h.b16 %v324
        %v636 = vunpack.c.l.b16 %v325
        %v637 = vunpack.c.h.b16 %v325
        %v638 = vunpack.c.l.b16 %v326
        %v639 = vunpack.c.h.b16 %v326
        %v640 = vunpack.c.l.b16 %v327
        %v641 = vunpack.c.h.b16 %v327
        %v642 = vunpack.c.l.b16 %v328
        %v643 = vunpack.c.h.b16 %v328
        %v644 = vunpack.c.l.b16 %v329
        %v645 = vunpack.c.h.b16 %v329
        %v646 = vunpack.c.l.b16 %v330
        %v647 = vunpack.c.h.b16 %v330
        %v648 = vunpack.c.l.b16 %v331
        %v649 = vunpack.c.h.b16 %v331
        %v650 = vunpack.c.l.b16 %v332
        %v651 = vunpack.c.h.b16 %v332
        %v652 = vunpack.c.l.b16 %v333
        %v653 = vunpack.c.h.b16 %v333
        %v654 = vunpack.c.l.b16 %v334
        %v655 = vunpack.c.h.b16 %v334
        %v656 = vunpack.c.l.b16 %v335
        %v657 = vunpack.c.h.b16 %v335
        %v658 = vunpack.c.l.b16 %v336
        %v659 = vunpack.c.h.b16 %v336
        %v660 = vunpack.c.l.b16 %v337
        %v661 = vunpack.c.h.b16 %v337
        %v662 = vunpack.c.l.b16 %v338
        %v663 = vunpack.c.h.b16 %v338
        %v664 = vunpack.c.l.b16 %v339
        %v665 = vunpack.c.h.b16 %v339
        %v666 = vunpack.c.l.b16 %v340
        %v667 = vunpack.c.h.b16 %v340
        %v668 = vunpack.c.l.b16 %v341
        %v669 = vunpack.c.h.b16 %v341
        %v670 = vunpack.c.l.b16 %v342
        %v671 = vunpack.c.h.b16 %v342
        %v672 = vunpack.c.l.b16 %v343
        %v673 = vunpack.c.h.b16 %v343
        %v674 = vunpack.c.l.b16 %v344
        %v675 = vunpack.c.h.b16 %v344
        %v676 = vunpack.c.l.b16 %v345
        %v677 = vunpack.c.h.b16 %v345
        %v678 = vunpack.c.l.b16 %v346
        %v679 = vunpack.c.h.b16 %v346
        %v680 = vunpack.c.l.b16 %v347
        %v681 = vunpack.c.h.b16 %v347
        %v682 = vunpack.c.l.b16 %v348
        %v683 = vunpack.c.h.b16 %v348
        %v684 = vunpack.c.l.b16 %v349
        %v685 = vunpack.c.h.b16 %v349
        %v686 = vunpack.c.l.b16 %v350
        %v687 = vunpack.c.h.b16 %v350
        %v688 = vunpack.c.l.b16 %v351
        %v689 = vunpack.c.h.b16 %v351
        %v690 = vunpack.c.l.b16 %v352
        %v691 = vunpack.c.h.b16 %v352
        %v692 = vunpack.c.l.b16 %v353
        %v693 = vunpack.c.h.b16 %v353
        %v694 = vunpack.c.l.b16 %v354
        %v695 = vunpack.c.h.b16 %v354
        %v696 = vunpack.c.l.b16 %v355
        %v697 = vunpack.c.h.b16 %v355
        %v698 = vunpack.c.l.b16 %v356
        %v699 = vunpack.c.h.b16 %v356
        %v700 = vunpack.c.l.b16 %v357
        %v701 = vunpack.c.h.b16 %v357
        %v702 = vunpack.c.l.b16 %v358
        %v703 = vunpack.c.h.b16 %v358
        %v704 = vunpack.c.l.b16 %v359
        %v705 = vunpack.c.h.b16 %v359
        %v706 = vunpack.c.l.b16 %v360
        %v707 = vunpack.c.h.b16 %v360
        %v708 = vunpack.c.l.b16 %v361
        %v709 = vunpack.c.h.b16 %v361
        %v710 = vunpack.c.l.b16 %v362
        %v711 = vunpack.c.h.b16 %v362
        %v712 = vunpack.c.l.b16 %v363
        %v713 = vunpack.c.h.b16 %v363
        %v714 = vunpack.c.l.b16 %v364
        %v715 = vunpack.c.h.b16 %v364
        %v716 = vunpack.c.l.b16 %v365
        %v717 = vunpack.c.h.b16 %v365
        %v718 = vunpack.c.l.b16 %v366
        %v719 = vunpack.c.h.b16 %v366
        %v720 = vunpack.c.l.b16 %v367
        %v721 = vunpack.c.h.b16 %v367
        %v722 = vunpack.c.l.b16 %v368
        %v723 = vunpack.c.h.b16 %v368
        %v724 = vunpack.c.l.b16 %v369
        %v725 = vunpack.c.h.b16 %v369
        %v726 = vunpack.c.l.b16 %v370
        %v727 = vunpack.c.h.b16 %v370
        %v728 = vunpack.c.l.b16 %v371
        %v729 = vunpack.c.h.b16 %v371
        %v730 = vunpack.c.l.b16 %v372
        %v731 = vunpack.c.h.b16 %v372
        %v732 = vunpack.c.l.b16 %v373
        %v733 = vunpack.c.h.b16 %v373
        %v734 = vunpack.c.l.b16 %v374
        %v735 = vunpack.c.h.b16 %v374
        %v736 = vunpack.c.l.b16 %v375
        %v737 = vunpack.c.h.b16 %v375
        %v738 = vunpack.c.l.b16 %v376
        %v739 = vunpack.c.h.b16 %v376
        %v740 = vunpack.c.l.b16 %v377
        %v741 = vunpack.c.h.b16 %v377
        %v742 = vunpack.c.l.b16 %v378
        %v743 = vunpack.c.h.b16 %v378
        %v744 = vunpack.c.l.b16 %v379
        %v745 = vunpack.c.h.b16 %v379
        %v746 = vunpack.c.l.b16 %v380
        %v747 = vunpack.c.h.b16 %v380
        %v748 = vunpack.c.l.b16 %v381
        %v749 = vunpack.c.h.b16 %v381
        %v750 = vunpack.c.l.b16 %v382
        %v751 = vunpack.c.h.b16 %v382
        %v752 = vunpack.c.l.b16 %v383
        %v753 = vunpack.c.h.b16 %v383
        %v754 = vunpack.c.l.b16 %v384
        %v755 = vunpack.c.h.b16 %v384
        %v756 = vunpack.c.l.b16 %v385
        %v757 = vunpack.c.h.b16 %v385
        %v758 = vunpack.c.l.b16 %v386
        %v759 = vunpack.c.h.b16 %v386
        %v760 = vunpack.c.l.b16 %v387
        %v761 = vunpack.c.h.b16 %v387
        %v762 = vunpack.c.l.b16 %v388
        %v763 = vunpack.c.h.b16 %v388
        %v764 = vunpack.c.l.b16 %v389
        %v765 = vunpack.c.h.b16 %v389
        %v766 = vunpack.c.l.b16 %v390
        %v767 = vunpack.c.h.b16 %v390
        %v768 = vunpack.c.l.b16 %v391
        %v769 = vunpack.c.h.b16 %v391
        %v770 = vunpack.c.l.b16 %v392
        %v771 = vunpack.c.h.b16 %v392
        %v772 = vunpack.c.l.b16 %v393
        %v773 = vunpack.c.h.b16 %v393
        %v774 = vunpack.c.l.b16 %v394
        %v775 = vunpack.c.h.b16 %v394
        %v776 = vunpack.c.l.b16 %v395
        %v777 = vunpack.c.h.b16 %v395
        %v778 = vunpack.c.l.b16 %v396
        %v779 = vunpack.c.h.b16 %v396
        %v780 = vunpack.c.l.b16 %v397
        %v781 = vunpack.c.h.b16 %v397
        %v782 = vunpack.c.l.b16 %v398
        %v783 = vunpack.c.h.b16 %v398
        %v784 = vunpack.c.l.b16 %v399
        %v785 = vunpack.c.h.b16 %v399
        %v786 = vunpack.c.l.b16 %v400
        %v787 = vunpack.c.h.b16 %v400
        %v788 = vunpack.c.l.b16 %v401
        %v789 = vunpack.c.h.b16 %v401
        %v790 = vunpack.c.l.b16 %v402
        %v791 = vunpack.c.h.b16 %v402
        %v792 = vunpack.c.l.b16 %v403
        %v793 = vunpack.c.h.b16 %v403
        %v794 = vunpack.c.l.b16 %v404
        %v795 = vunpack.c.h.b16 %v404
        %v796 = vunpack.c.l.b16 %v405
        %v797 = vunpack.c.h.b16 %v405
        %v798 = vunpack.c.l.b16 %v406
        %v799 = vunpack.c.h.b16 %v406
        %v800 = vunpack.c.l.b16 %v407
        %v801 = vunpack.c.h.b16 %v407
        %v802 = vunpack.c.l.b16 %v408
        %v803 = vunpack.c.h.b16 %v408
        %v804 = vunpack.c.l.b16 %v409
        %v805 = vunpack.c.h.b16 %v409
        %v806 = vunpack.c.l.b16 %v410
        %v807 = vunpack.c.h.b16 %v410
        %v808 = vunpack.c.l.b16 %v411
        %v809 = vunpack.c.h.b16 %v411
        %v810 = vunpack.c.l.b16 %v412
        %v811 = vunpack.c.h.b16 %v412
        %v812 = vunpack.c.l.b16 %v413
        %v813 = vunpack.c.h.b16 %v413
        %v814 = vunpack.c.l.b16 %v414
        %v815 = vunpack.c.h.b16 %v414
        %v816 = vunpack.c.l.b16 %v415
        %v817 = vunpack.c.h.b16 %v415
        %v818 = vunpack.c.l.b16 %v416
        %v819 = vunpack.c.h.b16 %v416
        %v820 = vunpack.c.l.b16 %v417
        %v821 = vunpack.c.h.b16 %v417
        %v822 = vunpack.c.l.b16 %v418
        %v823 = vunpack.c.h.b16 %v418
        %v824 = vunpack.c.l.b16 %v419
        %v825 = vunpack.c.h.b16 %v419
        %v826 = vunpack.c.l.b16 %v420
        %v827 = vunpack.c.h.b16 %v420
        %v828 = vunpack.c.l.b16 %v421
        %v829 = vunpack.c.h.b16 %v421
        %v830 = vunpack.c.l.b16 %v422
        %v831 = vunpack.c.h.b16 %v422
        %v832 = vunpack.c.l.b16 %v423
        %v833 = vunpack.c.h.b16 %v423
        %v834 = vunpack.c.l.b16 %v424
        %v835 = vunpack.c.h.b16 %v424
        %v836 = vunpack.c.l.b16 %v425
        %v837 = vunpack.c.h.b16 %v425
        %v838 = vunpack.c.l.b16 %v426
        %v839 = vunpack.c.h.b16 %v426
        %v840 = vunpack.c.l.b16 %v427
        %v841 = vunpack.c.h.b16 %v427
        %v842 = vunpack.c.l.b16 %v428
        %v843 = vunpack.c.h.b16 %v428
        %v844 = vunpack.c.l.b16 %v429
        %v845 = vunpack.c.h.b16 %v429
        %v846 = vunpack.c.l.b16 %v430
        %v847 = vunpack.c.h.b16 %v430
        %v848 = vunpack.c.l.b16 %v431
        %v849 = vunpack.c.h.b16 %v431
        %v850 = vunpack.c.l.b16 %v432
        %v851 = vunpack.c.h.b16 %v432
        %v852 = vunpack.c.l.b16 %v433
        %v853 = vunpack.c.h.b16 %v433
        %v854 = vunpack.c.l.b16 %v434
        %v855 = vunpack.c.h.b16 %v434
        %v856 = vunpack.c.l.b16 %v435
        %v857 = vunpack.c.h.b16 %v435
        %v858 = vunpack.c.l.b16 %v436
        %v859 = vunpack.c.h.b16 %v436
        %v860 = vunpack.c.l.b16 %v437
        %v861 = vunpack.c.h.b16 %v437
        %v862 = vunpack.c.l.b16 %v438
        %v863 = vunpack.c.h.b16 %v438
        %v864 = vunpack.c.l.b16 %v439
        %v865 = vunpack.c.h.b16 %v439
        %v866 = vunpack.c.l.b16 %v440
        %v867 = vunpack.c.h.b16 %v440
        %v868 = vunpack.c.l.b16 %v441
        %v869 = vunpack.c.h.b16 %v441
        %v870 = vunpack.c.l.b16 %v442
        %v871 = vunpack.c.h.b16 %v442
        %v872 = vunpack.c.l.b16 %v443
        %v873 = vunpack.c.h.b16 %v443
        %v874 = vunpack.c.l.b16 %v444
        %v875 = vunpack.c.h.b16 %v444
        %v876 = vunpack.c.l.b16 %v445
        %v877 = vunpack.c.h.b16 %v445
        %v878 = vunpack.c.l.b16 %v446
        %v879 = vunpack.c.h.b16 %v446
        %v880 = vunpack.c.l.b16 %v447
        %v881 = vunpack.c.h.b16 %v447
        %v882 = vunpack.c.l.b16 %v448
        %v883 = vunpack.c.h.b16 %v448
        %v884 = vunpack.c.l.b16 %v449
        %v885 = vunpack.c.h.b16 %v449
        %v886 = vunpack.c.l.b16 %v450
        %v887 = vunpack.c.h.b16 %v450
        %v888 = vunpack.c.l.b16 %v451
        %v889 = vunpack.c.h.b16 %v451
        %v890 = vunpack.c.l.b16 %v452
        %v891 = vunpack.c.h.b16 %v452
        %v892 = vunpack.c.l.b16 %v453
        %v893 = vunpack.c.h.b16 %v453
        %v894 = vunpack.c.l.b16 %v454
        %v895 = vunpack.c.h.b16 %v454
        %v896 = vunpack.c.l.b16 %v455
        %v897 = vunpack.c.h.b16 %v455
        %v898 = vunpack.c.l.b16 %v456
        %v899 = vunpack.c.h.b16 %v456
        %v900 = vunpack.c.l.b16 %v457
        %v901 = vunpack.c.h.b16 %v457
        %v902 = vunpack.c.l.b16 %v458
        %v903 = vunpack.c.h.b16 %v458
        %v904 = vunpack.c.l.b16 %v459
        %v905 = vunpack.c.h.b16 %v459
        %v906 = vunpack.c.l.b16 %v460
        %v907 = vunpack.c.h.b16 %v460
        %v908 = vunpack.c.l.b16 %v461
        %v909 = vunpack.c.h.b16 %v461
        %v910 = vunpack.c.l.b16 %v462
        %v911 = vunpack.c.h.b16 %v462
        %v912 = vpack.c.b16 %v630, %v624
        %v913 = vpack.c.b16 %v631, %v625
        %v914 = vpack.c.b16 %v632, %v626
        %v915 = vpack.c.b16 %v633, %v627
        %v916 = vpack.c.b16 %v634, %v628
        %v917 = vpack.c.b16 %v635, %v629
        %v918 = vpack.c.b16 %v642, %v636
        %v919 = vpack.c.b16 %v643, %v637
        %v920 = vpack.c.b16 %v644, %v638
        %v921 = vpack.c.b16 %v645, %v639
        %v922 = vpack.c.b16 %v646, %v640
        %v923 = vpack.c.b16 %v647, %v641
        %v924 = vpack.c.b16 %v654, %v648
        %v925 = vpack.c.b16 %v655, %v649
        %v926 = vpack.c.b16 %v656, %v650
        %v927 = vpack.c.b16 %v657, %v651
        %v928 = vpack.c.b16 %v658, %v652
        %v929 = vpack.c.b16 %v659, %v653
        %v930 = vpack.c.b16 %v666, %v660
        %v931 = vpack.c.b16 %v667, %v661
        %v932 = vpack.c.b16 %v668, %v662
        %v933 = vpack.c.b16 %v669, %v663
        %v934 = vpack.c.b16 %v670, %v664
        %v935 = vpack.c.b16 %v671, %v665
        %v936 = vpack.c.b16 %v678, %v672
        %v937 = vpack.c.b16 %v679, %v673
        %v938 = vpack.c.b16 %v680, %v674
        %v939 = vpack.c.b16 %v681, %v675
        %v940 = vpack.c.b16 %v682, %v676
        %v941 = vpack.c.b16 %v683, %v677
        %v942 = vpack.c.b16 %v690, %v684
        %v943 = vpack.c.b16 %v691, %v685
        %v944 = vpack.c.b16 %v692, %v686
        %v945 = vpack.c.b16 %v693, %v687
        %v946 = vpack.c.b16 %v694, %v688
        %v947 = vpack.c.b16 %v695, %v689
        %v948 = vpack.c.b16 %v702, %v696
        %v949 = vpack.c.b16 %v703, %v697
        %v950 = vpack.c.b16 %v704, %v698
        %v951 = vpack.c.b16 %v705, %v699
        %v952 = vpack.c.b16 %v706, %v700
        %v953 = vpack.c.b16 %v707, %v701
        %v954 = vpack.c.b16 %v714, %v708
        %v955 = vpack.c.b16 %v715, %v709
        %v956 = vpack.c.b16 %v716, %v710
        %v957 = vpack.c.b16 %v717, %v711
        %v958 = vpack.c.b16 %v718, %v712
        %v959 = vpack.c.b16 %v719, %v713
        %v960 = vpack.c.b16 %v726, %v720
        %v961 = vpack.c.b16 %v727, %v721
        %v962 = vpack.c.b16 %v728, %v722
        %v963 = vpack.c.b16 %v729, %v723
        %v964 = vpack.c.b16 %v730, %v724
        %v965 = vpack.c.b16 %v731, %v725
        %v966 = vpack.c.b16 %v738, %v732
        %v967 = vpack.c.b16 %v739, %v733
        %v968 = vpack.c.b16 %v740, %v734
        %v969 = vpack.c.b16 %v741, %v735
        %v970 = vpack.c.b16 %v742, %v736
        %v971 = vpack.c.b16 %v743, %v737
        %v972 = vpack.c.b16 %v750, %v744
        %v973 = vpack.c.b16 %v751, %v745
        %v974 = vpack.c.b16 %v752, %v746
        %v975 = vpack.c.b16 %v753, %v747
        %v976 = vpack.c.b16 %v754, %v748
        %v977 = vpack.c.b16 %v755, %v749
        %v978 = vpack.c.b16 %v762, %v756
        %v979 = vpack.c.b16 %v763, %v757
        %v980 = vpack.c.b16 %v764, %v758
        %v981 = vpack.c.b16 %v765, %v759
        %v982 = vpack.c.b16 %v766, %v760
        %v983 = vpack.c.b16 %v767, %v761
        %v984 = vpack.c.b16 %v774, %v768
        %v985 = vpack.c.b16 %v775, %v769
        %v986 = vpack.c.b16 %v776, %v770
        %v987 = vpack.c.b16 %v777, %v771
        %v988 = vpack.c.b16 %v778, %v772
        %v989 = vpack.c.b16 %v779, %v773
        %v990 = vpack.c.b16 %v786, %v780
        %v991 = vpack.c.b16 %v787, %v781
        %v992 = vpack.c.b16 %v788, %v782
        %v993 = vpack.c.b16 %v789, %v783
        %v994 = vpack.c.b16 %v790, %v784
        %v995 = vpack.c.b16 %v791, %v785
        %v996 = vpack.c.b16 %v798, %v792
        %v997 = vpack.c.b16 %v799, %v793
        %v998 = vpack.c.b16 %v800, %v794
        %v999 = vpack.c.b16 %v801, %v795
        %v1000 = vpack.c.b16 %v802, %v796
        %v1001 = vpack.c.b16 %v803, %v797
        %v1002 = vpack.c.b16 %v810, %v804
        %v1003 = vpack.c.b16 %v811, %v805
        %v1004 = vpack.c.b16 %v812, %v806
        %v1005 = vpack.c.b16 %v813, %v807
        %v1006 = vpack.c.b16 %v814, %v808
        %v1007 = vpack.c.b16 %v815, %v809
        %v1008 = vpack.c.b16 %v822, %v816
        %v1009 = vpack.c.b16 %v823, %v817
        %v1010 = vpack.c.b16 %v824, %v818
        %v1011 = vpack.c.b16 %v825, %v819
        %v1012 = vpack.c.b16 %v826, %v820
        %v1013 = vpack.c.b16 %v827, %v821
        %v1014 = vpack.c.b16 %v834, %v828
        %v1015 = vpack.c.b16 %v835, %v829
        %v1016 = vpack.c.b16 %v836, %v830
        %v1017 = vpack.c.b16 %v837, %v831
        %v1018 = vpack.c.b16 %v838, %v832
        %v1019 = vpack.c.b16 %v839, %v833
        %v1020 = vpack.c.b16 %v846, %v840
        %v1021 = vpack.c.b16 %v847, %v841
        %v1022 = vpack.c.b16 %v848, %v842
        %v1023 = vpack.c.b16 %v849, %v843
        %v1024 = vpack.c.b16 %v850, %v844
        %v1025 = vpack.c.b16 %v851, %v845
        %v1026 = vpack.c.b16 %v858, %v852
        %v1027 = vpack.c.b16 %v859, %v853
        %v1028 = vpack.c.b16 %v860, %v854
        %v1029 = vpack.c.b16 %v861, %v855
        %v1030 = vpack.c.b16 %v862, %v856
        %v1031 = vpack.c.b16 %v863, %v857
        %v1032 = vpack.c.b16 %v870, %v864
        %v1033 = vpack.c.b16 %v871, %v865
        %v1034 = vpack.c.b16 %v872, %v866
        %v1035 = vpack.c.b16 %v873, %v867
        %v1036 = vpack.c.b16 %v874, %v868
        %v1037 = vpack.c.b16 %v875, %v869
        %v1038 = vpack.c.b16 %v882, %v876
        %v1039 = vpack.c.b16 %v883, %v877
        %v1040 = vpack.c.b16 %v884, %v878
        %v1041 = vpack.c.b16 %v885, %v879
        %v1042 = vpack.c.b16 %v886, %v880
        %v1043 = vpack.c.b16 %v887, %v881
        %v1044 = vpack.c.b16 %v894, %v888
        %v1045 = vpack.c.b16 %v895, %v889
        %v1046 = vpack.c.b16 %v896, %v890
        %v1047 = vpack.c.b16 %v897, %v891
        %v1048 = vpack.c.b16 %v898, %v892
        %v1049 = vpack.c.b16 %v899, %v893
        %v1050 = vpack.c.b16 %v906, %v900
        %v1051 = vpack.c.b16 %v907, %v901
        %v1052 = vpack.c.b16 %v908, %v902
        %v1053 = vpack.c.b16 %v909, %v903
        %v1054 = vpack.c.b16 %v910, %v904
        %v1055 = vpack.c.b16 %v911, %v905
        %1200 = vmatprep.subr.bf16.mxu0 %v913
        %1201 = vmatpush1.bf16.msra.mxu0 %v912
        %1202 = vmatprep.subr.bf16.mxu0 %v919
        %1203 = vmatpush1.bf16.msra.mxu0 %v918
        %1204 = vmatprep.subr.bf16.mxu0 %v925
        %1205 = vmatpush1.bf16.msra.mxu0 %v924
        %1206 = vmatprep.subr.bf16.mxu0 %v931
        %1207 = vmatpush1.bf16.msra.mxu0 %v930
        %1208 = vmatprep.subr.bf16.mxu0 %v937
        %1209 = vmatpush1.bf16.msra.mxu0 %v936
        %1210 = vmatprep.subr.bf16.mxu0 %v943
        %1211 = vmatpush1.bf16.msra.mxu0 %v942
        %1212 = vmatprep.subr.bf16.mxu0 %v949
        %1213 = vmatpush1.bf16.msra.mxu0 %v948
        %1214 = vmatprep.subr.bf16.mxu0 %v955
        %1215 = vmatpush1.bf16.msra.mxu0 %v954
        %1216 = vmatprep.subr.bf16.mxu0 %v961
        %1217 = vmatpush1.bf16.msra.mxu0 %v960
        %1218 = vmatprep.subr.bf16.mxu0 %v967
        %1219 = vmatpush1.bf16.msra.mxu0 %v966
        %1220 = vmatprep.subr.bf16.mxu0 %v973
        %1221 = vmatpush1.bf16.msra.mxu0 %v972
        %1222 = vmatprep.subr.bf16.mxu0 %v979
        %1223 = vmatpush1.bf16.msra.mxu0 %v978
        %1224 = vmatprep.subr.bf16.mxu0 %v985
        %1225 = vmatpush1.bf16.msra.mxu0 %v984
        %1226 = vmatprep.subr.bf16.mxu0 %v991
        %1227 = vmatpush1.bf16.msra.mxu0 %v990
        %1228 = vmatprep.subr.bf16.mxu0 %v997
        %1229 = vmatpush1.bf16.msra.mxu0 %v996
        %1230 = vmatprep.subr.bf16.mxu0 %v1003
        %1231 = vmatpush1.bf16.msra.mxu0 %v1002
        %1232 = vmatprep.mubr.bf16.mxu0 %v475
        %1233 = vmatmul.mubr.bf16.gmra.mrb[0].mxu0 %v474
        %v1234 = vpop.f32.mrb[0].mxu0
        %v1235 = vadd.f32 %v463, %v1234
        %v1236 = vpop.f32.mrb[0].mxu0
        %v1237 = vadd.f32 %v464, %v1236
        %v1238 = vpop.f32.mrb[0].mxu0
        %v1239 = vpop.f32.mrb[0].mxu0
        %1240 = vdwg.mxu0
        %1241 = vmatprep.subr.bf16.mxu0 %v1009
        %1242 = vmatpush1.bf16.msra.mxu0 %v1008
        %1243 = vmatprep.subr.bf16.mxu0 %v1015
        %1244 = vmatpush1.bf16.msra.mxu0 %v1014
        %1245 = vmatprep.subr.bf16.mxu0 %v1021
        %1246 = vmatpush1.bf16.msra.mxu0 %v1020
        %1247 = vmatprep.subr.bf16.mxu0 %v1027
        %1248 = vmatpush1.bf16.msra.mxu0 %v1026
        %1249 = vmatprep.subr.bf16.mxu0 %v1033
        %1250 = vmatpush1.bf16.msra.mxu0 %v1032
        %1251 = vmatprep.subr.bf16.mxu0 %v1039
        %1252 = vmatpush1.bf16.msra.mxu0 %v1038
        %1253 = vmatprep.subr.bf16.mxu0 %v1045
        %1254 = vmatpush1.bf16.msra.mxu0 %v1044
        %1255 = vmatprep.subr.bf16.mxu0 %v1051
        %1256 = vmatpush1.bf16.msra.mxu0 %v1050
        %1257 = vmatprep.subr.bf16.mxu0 0
        %1258 = vmatpush1.bf16.msra.mxu0 0
        %1259 = vmatprep.subr.bf16.mxu0 0
        %1260 = vmatpush1.bf16.msra.mxu0 0
        %1261 = vmatprep.subr.bf16.mxu0 0
        %1262 = vmatpush1.bf16.msra.mxu0 0
        %1263 = vmatprep.subr.bf16.mxu0 0
        %1264 = vmatpush1.bf16.msra.mxu0 0
        %1265 = vmatprep.subr.bf16.mxu0 0
        %1266 = vmatpush1.bf16.msra.mxu0 0
        %1267 = vmatprep.subr.bf16.mxu0 0
        %1268 = vmatpush1.bf16.msra.mxu0 0
        %1269 = vmatprep.subr.bf16.mxu0 0
        %1270 = vmatpush1.bf16.msra.mxu0 0
        %1271 = vmatprep.subr.bf16.mxu0 0
        %1272 = vmatpush1.bf16.msra.mxu0 0
        %1273 = vmatprep.mubr.bf16.mxu0 0
        %1274 = vmatmul.mubr.bf16.gmra.mrb[0].mxu0 %v476
        %v1275 = vpop.f32.mrb[0].mxu0
        %v1276 = vadd.f32 %v1235, %v1275
        %v1277 = vpop.f32.mrb[0].mxu0
        %v1278 = vadd.f32 %v1237, %v1277
        %v1279 = vpop.f32.mrb[0].mxu0
        %v1280 = vpop.f32.mrb[0].mxu0
        %1281 = vdwg.mxu0
        %1282 = vmatprep.subr.bf16.mxu0 %v915
        %1283 = vmatpush1.bf16.msra.mxu0 %v914
        %1284 = vmatprep.subr.bf16.mxu0 %v921
        %1285 = vmatpush1.bf16.msra.mxu0 %v920
        %1286 = vmatprep.subr.bf16.mxu0 %v927
        %1287 = vmatpush1.bf16.msra.mxu0 %v926
        %1288 = vmatprep.subr.bf16.mxu0 %v933
        %1289 = vmatpush1.bf16.msra.mxu0 %v932
        %1290 = vmatprep.subr.bf16.mxu0 %v939
        %1291 = vmatpush1.bf16.msra.mxu0 %v938
        %1292 = vmatprep.subr.bf16.mxu0 %v945
        %1293 = vmatpush1.bf16.msra.mxu0 %v944
        %1294 = vmatprep.subr.bf16.mxu0 %v951
        %1295 = vmatpush1.bf16.msra.mxu0 %v950
        %1296 = vmatprep.subr.bf16.mxu0 %v957
        %1297 = vmatpush1.bf16.msra.mxu0 %v956
        %1298 = vmatprep.subr.bf16.mxu0 %v963
        %1299 = vmatpush1.bf16.msra.mxu0 %v962
        %1300 = vmatprep.subr.bf16.mxu0 %v969
        %1301 = vmatpush1.bf16.msra.mxu0 %v968
        %1302 = vmatprep.subr.bf16.mxu0 %v975
        %1303 = vmatpush1.bf16.msra.mxu0 %v974
        %1304 = vmatprep.subr.bf16.mxu0 %v981
        %1305 = vmatpush1.bf16.msra.mxu0 %v980
        %1306 = vmatprep.subr.bf16.mxu0 %v987
        %1307 = vmatpush1.bf16.msra.mxu0 %v986
        %1308 = vmatprep.subr.bf16.mxu0 %v993
        %1309 = vmatpush1.bf16.msra.mxu0 %v992
        %1310 = vmatprep.subr.bf16.mxu0 %v999
        %1311 = vmatpush1.bf16.msra.mxu0 %v998
        %1312 = vmatprep.subr.bf16.mxu0 %v1005
        %1313 = vmatpush1.bf16.msra.mxu0 %v1004
        %1314 = vmatprep.mubr.bf16.mxu0 %v475
        %1315 = vmatmul.mubr.bf16.gmra.mrb[0].mxu0 %v474
        %v1316 = vpop.f32.mrb[0].mxu0
        %v1317 = vadd.f32 %v465, %v1316
        %v1318 = vpop.f32.mrb[0].mxu0
        %v1319 = vadd.f32 %v466, %v1318
        %v1320 = vpop.f32.mrb[0].mxu0
        %v1321 = vpop.f32.mrb[0].mxu0
        %1322 = vdwg.mxu0
        %1323 = vmatprep.subr.bf16.mxu0 %v1011
        %1324 = vmatpush1.bf16.msra.mxu0 %v1010
        %1325 = vmatprep.subr.bf16.mxu0 %v1017
        %1326 = vmatpush1.bf16.msra.mxu0 %v1016
        %1327 = vmatprep.subr.bf16.mxu0 %v1023
        %1328 = vmatpush1.bf16.msra.mxu0 %v1022
        %1329 = vmatprep.subr.bf16.mxu0 %v1029
        %1330 = vmatpush1.bf16.msra.mxu0 %v1028
        %1331 = vmatprep.subr.bf16.mxu0 %v1035
        %1332 = vmatpush1.bf16.msra.mxu0 %v1034
        %1333 = vmatprep.subr.bf16.mxu0 %v1041
        %1334 = vmatpush1.bf16.msra.mxu0 %v1040
        %1335 = vmatprep.subr.bf16.mxu0 %v1047
        %1336 = vmatpush1.bf16.msra.mxu0 %v1046
        %1337 = vmatprep.subr.bf16.mxu0 %v1053
        %1338 = vmatpush1.bf16.msra.mxu0 %v1052
        %1339 = vmatprep.subr.bf16.mxu0 0
        %1340 = vmatpush1.bf16.msra.mxu0 0
        %1341 = vmatprep.subr.bf16.mxu0 0
        %1342 = vmatpush1.bf16.msra.mxu0 0
        %1343 = vmatprep.subr.bf16.mxu0 0
        %1344 = vmatpush1.bf16.msra.mxu0 0
        %1345 = vmatprep.subr.bf16.mxu0 0
        %1346 = vmatpush1.bf16.msra.mxu0 0
        %1347 = vmatprep.subr.bf16.mxu0 0
        %1348 = vmatpush1.bf16.msra.mxu0 0
        %1349 = vmatprep.subr.bf16.mxu0 0
        %1350 = vmatpush1.bf16.msra.mxu0 0
        %1351 = vmatprep.subr.bf16.mxu0 0
        %1352 = vmatpush1.bf16.msra.mxu0 0
        %1353 = vmatprep.subr.bf16.mxu0 0
        %1354 = vmatpush1.bf16.msra.mxu0 0
        %1355 = vmatprep.mubr.bf16.mxu0 0
        %1356 = vmatmul.mubr.bf16.gmra.mrb[0].mxu0 %v476
        %v1357 = vpop.f32.mrb[0].mxu0
        %v1358 = vadd.f32 %v1317, %v1357
        %v1359 = vpop.f32.mrb[0].mxu0
        %v1360 = vadd.f32 %v1319, %v1359
        %v1361 = vpop.f32.mrb[0].mxu0
        %v1362 = vpop.f32.mrb[0].mxu0
        %1363 = vdwg.mxu0
        %1364 = vmatprep.subr.bf16.mxu0 %v917
        %1365 = vmatpush1.bf16.msra.mxu0 %v916
        %1366 = vmatprep.subr.bf16.mxu0 %v923
        %1367 = vmatpush1.bf16.msra.mxu0 %v922
        %1368 = vmatprep.subr.bf16.mxu0 %v929
        %1369 = vmatpush1.bf16.msra.mxu0 %v928
        %1370 = vmatprep.subr.bf16.mxu0 %v935
        %1371 = vmatpush1.bf16.msra.mxu0 %v934
        %1372 = vmatprep.subr.bf16.mxu0 %v941
        %1373 = vmatpush1.bf16.msra.mxu0 %v940
        %1374 = vmatprep.subr.bf16.mxu0 %v947
        %1375 = vmatpush1.bf16.msra.mxu0 %v946
        %1376 = vmatprep.subr.bf16.mxu0 %v953
        %1377 = vmatpush1.bf16.msra.mxu0 %v952
        %1378 = vmatprep.subr.bf16.mxu0 %v959
        %1379 = vmatpush1.bf16.msra.mxu0 %v958
        %1380 = vmatprep.subr.bf16.mxu0 %v965
        %1381 = vmatpush1.bf16.msra.mxu0 %v964
        %1382 = vmatprep.subr.bf16.mxu0 %v971
        %1383 = vmatpush1.bf16.msra.mxu0 %v970
        %1384 = vmatprep.subr.bf16.mxu0 %v977
        %1385 = vmatpush1.bf16.msra.mxu0 %v976
        %1386 = vmatprep.subr.bf16.mxu0 %v983
        %1387 = vmatpush1.bf16.msra.mxu0 %v982
        %1388 = vmatprep.subr.bf16.mxu0 %v989
        %1389 = vmatpush1.bf16.msra.mxu0 %v988
        %1390 = vmatprep.subr.bf16.mxu0 %v995
        %1391 = vmatpush1.bf16.msra.mxu0 %v994
        %1392 = vmatprep.subr.bf16.mxu0 %v1001
        %1393 = vmatpush1.bf16.msra.mxu0 %v1000
        %1394 = vmatprep.subr.bf16.mxu0 %v1007
        %1395 = vmatpush1.bf16.msra.mxu0 %v1006
        %1396 = vmatprep.mubr.bf16.mxu0 %v475
        %1397 = vmatmul.mubr.bf16.gmra.mrb[0].mxu0 %v474
        %v1398 = vpop.f32.mrb[0].mxu0
        %v1399 = vadd.f32 %v467, %v1398
        %v1400 = vpop.f32.mrb[0].mxu0
        %v1401 = vadd.f32 %v468, %v1400
        %v1402 = vpop.f32.mrb[0].mxu0
        %v1403 = vpop.f32.mrb[0].mxu0
        %1404 = vdwg.mxu0
        %1405 = vmatprep.subr.bf16.mxu0 %v1013
        %1406 = vmatpush1.bf16.msra.mxu0 %v1012
        %1407 = vmatprep.subr.bf16.mxu0 %v1019
        %1408 = vmatpush1.bf16.msra.mxu0 %v1018
        %1409 = vmatprep.subr.bf16.mxu0 %v1025
        %1410 = vmatpush1.bf16.msra.mxu0 %v1024
        %1411 = vmatprep.subr.bf16.mxu0 %v1031
        %1412 = vmatpush1.bf16.msra.mxu0 %v1030
        %1413 = vmatprep.subr.bf16.mxu0 %v1037
        %1414 = vmatpush1.bf16.msra.mxu0 %v1036
        %1415 = vmatprep.subr.bf16.mxu0 %v1043
        %1416 = vmatpush1.bf16.msra.mxu0 %v1042
        %1417 = vmatprep.subr.bf16.mxu0 %v1049
        %1418 = vmatpush1.bf16.msra.mxu0 %v1048
        %1419 = vmatprep.subr.bf16.mxu0 %v1055
        %1420 = vmatpush1.bf16.msra.mxu0 %v1054
        %1421 = vmatprep.subr.bf16.mxu0 0
        %1422 = vmatpush1.bf16.msra.mxu0 0
        %1423 = vmatprep.subr.bf16.mxu0 0
        %1424 = vmatpush1.bf16.msra.mxu0 0
        %1425 = vmatprep.subr.bf16.mxu0 0
        %1426 = vmatpush1.bf16.msra.mxu0 0
        %1427 = vmatprep.subr.bf16.mxu0 0
        %1428 = vmatpush1.bf16.msra.mxu0 0
        %1429 = vmatprep.subr.bf16.mxu0 0
        %1430 = vmatpush1.bf16.msra.mxu0 0
        %1431 = vmatprep.subr.bf16.mxu0 0
        %1432 = vmatpush1.bf16.msra.mxu0 0
        %1433 = vmatprep.subr.bf16.mxu0 0
        %1434 = vmatpush1.bf16.msra.mxu0 0
        %1435 = vmatprep.subr.bf16.mxu0 0
        %1436 = vmatpush1.bf16.msra.mxu0 0
        %1437 = vmatprep.mubr.bf16.mxu0 0
        %1438 = vmatmul.mubr.bf16.gmra.mrb[0].mxu0 %v476
        %v1439 = vpop.f32.mrb[0].mxu0
        %v1440 = vadd.f32 %v1399, %v1439
        %v1441 = vpop.f32.mrb[0].mxu0
        %v1442 = vadd.f32 %v1401, %v1441
        %v1443 = vpop.f32.mrb[0].mxu0
        %v1444 = vpop.f32.mrb[0].mxu0
        %1445 = vdwg.mxu0
        %v1446 = vadd.f32 %v1276, %v1278
        %v1447 = vadd.f32 %v1446, %v1358
        %v1448 = vmul.f32 %v1447, 0.33333334
        %v1449 = vmul.f32 %v1360, 2.0
        %v1450 = vmul.f32 %v1449, 1.442695
        %v1451 = vpow.pop %v1450
        %v1452 = vsub.f32 %v1276, %v1448
        %v1453 = vmul.f32 %v1452, %v1452
        %v1454 = vadd.f32 %v1451, %v1453
        %v1455 = vmul.f32 %v1440, 2.0
        %v1456 = vmul.f32 %v1455, 1.442695
        %v1457 = vpow.pop %v1456
        %v1458 = vadd.f32 %v1454, %v1457
        %v1459 = vsub.f32 %v1278, %v1448
        %v1460 = vmul.f32 %v1459, %v1459
        %v1461 = vadd.f32 %v1458, %v1460
        %v1462 = vmul.f32 %v1442, 2.0
        %v1463 = vmul.f32 %v1462, 1.442695
        %v1464 = vpow.pop %v1463
        %v1465 = vadd.f32 %v1461, %v1464
        %v1466 = vsub.f32 %v1358, %v1448
        %v1467 = vmul.f32 %v1466, %v1466
        %v1468 = vadd.f32 %v1465, %v1467
        %v1469 = vmul.f32 %v1468, 0.33333334
        %v1470 = vlog2.pop %v1469
        %v1471 = vmul.f32 %v1470, 0.6931472
        %v1472 = vmul.f32 %v1471, 0.5
        %v1473 = vmul.f32 %v1472, 1.442695
        %v1474 = vpow.pop %v1473
        %v1475 = vld [vmem:[%s271] sm:$0xff]
        %v1476 = vmul.f32 %v1474, %v1475
        %v1477 = vadd.f32 %v1448, %v1476
        %1478 = vadd.xlane.f32.xlu0 %v1472
        %v1479 = vpop.xlane.xlu0 %1478
        %v1480 = vmul.f32 %v1479, 0.0625
        %1481 = vst [vmem:[%s308] sm:$0xff] %v1477
        %1482 = vst [vmem:[%s315] sm:$0xff] %v1480
        %s1483 = sand.u32 %s132, 1
        %s1484 = scalar_lea.sflag [#allocation4], %s1483
        %s1485 = sand.u32 %s132, 1
        %s1486 = smul.addr %s1485, 8
        %s1487 = scalar_lea.vmem [#allocation10], %s1486
        %s1488 = sand.u32 %s158, 1
        %s1489 = scalar_lea.sflag [#allocation12], %s1488
        %s1490 = sand.u32 %s158, 1
        %s1491 = smul.addr %s1490, 8
        %s1492 = scalar_lea.vmem [#allocation11], %s1491
        // Predicated region
        $region53: #{tpu_custom_call.1} parent=35 // pred_check
          %p1493 = pneg %p142
        $region54: #{tpu_custom_call.1} parent=35 // pred_check_branch
          %1495 = sbr.rel (%p1493) target = $region56
        $region55: #{tpu_custom_call.1} parent=35 // pred_region
          %s1497 = ssub.s32 128, 128
          %1498 = vsyncadd %s1484, %s1497
          %s1499 = smul.addr %s30, 128
          %s1500 = scalar_lea.hbm %s4, %s1499
          %s1502 = sshll.u32 %s1487, 4
          %s1503 = int_to_ptr.vmem [resolvable:$true] %s1502
          %1505 = dma.vmem_to_hbm [thread:$0]  %s1503, 128, %s1500, %s1484
        $region56: #{tpu_custom_call.1} parent=35 // pred_fallthru
          _
        // Predicated region
        $region57: #{tpu_custom_call.1} parent=35 // pred_check
          %p1506 = pneg %p168
        $region58: #{tpu_custom_call.1} parent=35 // pred_check_branch
          %1508 = sbr.rel (%p1506) target = $region60
        $region59: #{tpu_custom_call.1} parent=35 // pred_region
          %s1510 = ssub.s32 128, 128
          %1511 = vsyncadd %s1489, %s1510
          %s1512 = smul.addr %s30, 128
          %s1513 = scalar_lea.hbm %s5, %s1512
          %s1515 = sshll.u32 %s1492, 4
          %s1516 = int_to_ptr.vmem [resolvable:$true] %s1515
          %1518 = dma.vmem_to_hbm [thread:$0]  %s1516, 128, %s1513, %s1489
        $region60: #{tpu_custom_call.1} parent=35 // pred_fallthru
          _
      $region36: #{tpu_custom_call.1} parent=5 // pred_fallthru
        _
      %p1519 = scmp.le.s32.totalorder 2, %s25
      // Predicated region
      $region61: #{tpu_custom_call.1} parent=5 // pred_check
        %p1520 = pneg %p1519
      $region62: #{tpu_custom_call.1} parent=5 // pred_check_branch
        %1522 = sbr.rel (%p1520) target = $region64
      $region63: #{tpu_custom_call.1} parent=5 // pred_region
        %s1523 = ssub.s32 %s25, 2
        // Predicated region
        $region65: #{tpu_custom_call.1} parent=63 // pred_check
          %p1524 = pneg %p148
        $region66: #{tpu_custom_call.1} parent=63 // pred_check_branch
          %1526 = sbr.rel (%p1524) target = $region68
        $region67: #{tpu_custom_call.1} parent=63 // pred_region
          %s1527 = sand.u32 %s133, 1
          %s1528 = scalar_lea.sflag [#allocation4], %s1527
          %s1529 = sand.u32 %s133, 1
          %s1530 = smul.addr %s1529, 8
          %s1531 = scalar_lea.vmem [#allocation10], %s1530
          %1532 = dma.done %s1528, 128
        $region68: #{tpu_custom_call.1} parent=63 // pred_fallthru
          _
        // Predicated region
        $region69: #{tpu_custom_call.1} parent=63 // pred_check
          %p1533 = pneg %p174
        $region70: #{tpu_custom_call.1} parent=63 // pred_check_branch
          %1535 = sbr.rel (%p1533) target = $region72
        $region71: #{tpu_custom_call.1} parent=63 // pred_region
          %s1536 = sand.u32 %s159, 1
          %s1537 = scalar_lea.sflag [#allocation12], %s1536
          %s1538 = sand.u32 %s159, 1
          %s1539 = smul.addr %s1538, 8
          %s1540 = scalar_lea.vmem [#allocation11], %s1539
          %1541 = dma.done %s1537, 128
        $region72: #{tpu_custom_call.1} parent=63 // pred_fallthru
          _
      $region64: #{tpu_custom_call.1} parent=5 // pred_fallthru
        _
    $region6: #{tpu_custom_call.1} parent=1 // loop_footer
      %s29 = sadd.s32 1, %s25
    $region7: #{tpu_custom_call.1} parent=1 // loop_footer_branch
      %24 = sbr.rel target = $region3
    $region8: #{tpu_custom_call.1} parent=1 // loop_exit
      _
    %1542 = vsyncpa [#allocation3], 1
    %s1543 = scalar_lea.sflag [#allocation3], 1
    %1544 = vsyncpa %s1543, 1
    %1545 = vsyncpa [#allocation6], 1
    %s1546 = scalar_lea.sflag [#allocation6], 1
    %1547 = vsyncpa %s1546, 1
    %1548 = vsyncpa [#allocation9], 1
    %1549 = vsyncpa [#allocation4], 1
    %s1550 = scalar_lea.sflag [#allocation4], 1
    %1551 = vsyncpa %s1550, 1
    %1552 = vsyncpa [#allocation12], 1
    %s1553 = scalar_lea.sflag [#allocation12], 1
    %1554 = vsyncpa %s1553, 1

</llo_original>
